<compile_context>
chip_gen: v5e
topology: v5e:2x2
jax: 0.10.0
libtpu: 0.0.40
codegen_flags: <defaults>
</compile_context>

<pallas_src>
import numpy as np

import jax
import jax.numpy as jnp
from jax.experimental import pallas as pl
from jax.experimental.pallas import tpu as pltpu

SLAB_W = 128                      # lane width of packed slabs (one f32 lane tile)


def _rup8(x):
    return (x + 7) // 8 * 8


# ----------------------------------------------------------------------------
# Fused kernel factory: the whole BPNet forward (all BP layers) in one launch.
# ----------------------------------------------------------------------------
def _make_bpnet_kernel(cfgs, L, B):
    nbp = len(cfgs)

    def kernel(wslab_ref, aslab_ref, *out_refs):
        hout_ref = out_refs[nbp]

        # Running stacked-RNN hidden state: one (B, n) vreg-resident value per
        # stacked layer.  Initially every stacked layer's hidden is dl_dz.
        c0 = cfgs[0]
        dl_dz = aslab_ref[c0["dldz"]:c0["dldz"] + B, :c0["cin"]]      # (B, cin0)
        hs = [dl_dz] * L

        for i, c in enumerate(cfgs):
            n, cin, s = c["n"], c["cin"], c["s"]
            out_ref = out_refs[i]

            # ---- static, 8-row-aligned views into the packed slabs ---------
            wfit_t = wslab_ref[c["wfit"]:c["wfit"] + cin, :n]         # (cin, n)
            wih_t = [wslab_ref[c["wih"][l]:c["wih"][l] + n, :n] for l in range(L)]
            whh_t = [wslab_ref[c["whh"][l]:c["whh"][l] + n, :n] for l in range(L)]
            bcomb = wslab_ref[c["b"]:c["b"] + L, :n]                  # (L,n)=bih+bhh
            a = aslab_ref[c["a"]:c["a"] + 1, :n]                      # (1, n)
            p_t = aslab_ref[c["p"]:c["p"] + s, :n]                    # (s, n)

            # ---- FitNet linear + diagonal relu'(a) (hoisted broadcast) -----
            deriv = jnp.broadcast_to((a > 0.0).astype(jnp.float32), (B, n))
            if i == 0:
                # All stacked hiddens equal dl_dz on the first BP layer: one dot.
                f0 = jnp.dot(hs[0], wfit_t,
                             preferred_element_type=jnp.float32) * deriv
                hs = [f0] * L
            else:
                hs = [jnp.dot(hs[l], wfit_t,
                              preferred_element_type=jnp.float32) * deriv
                      for l in range(L)]

            # ---- layer-0 input projection hoisted over the whole sequence --
            #   xproj[t] = p_t[t] @ W_ih[0].T + b_ih[0] + b_hh[0]
            xproj = (jnp.dot(p_t, wih_t[0], preferred_element_type=jnp.float32)
                     + bcomb[0:1, :])                                  # (s, n)
            b_hi = [bcomb[l:l + 1, :] for l in range(1, L)]

            # ---- fully unrolled Elman recurrence ---------------------------
            for t in range(s):
                # Recurrent matmuls depend only on previous-step state ->
                # issue all L back-to-back so their MXU latencies overlap.
                rec = [jnp.dot(hs[l], whh_t[l],
                               preferred_element_type=jnp.float32)
                       for l in range(L)]
                x = jnp.tanh(rec[0] + xproj[t:t + 1, :])               # layer 0
                hs[0] = x
                for l in range(1, L):
                    x = jnp.tanh(jnp.dot(x, wih_t[l],
                                         preferred_element_type=jnp.float32)
                                 + rec[l] + b_hi[l - 1])
                    hs[l] = x
                out_ref[t] = x                                         # (B, n)

        for l in range(L):
            hout_ref[l] = hs[l]                                        # (B, n_last)

    return kernel


# ----------------------------------------------------------------------------
# Builder: pack weights into one slab, build the fused jitted forward.
# ----------------------------------------------------------------------------
def build_bpnet(node, num_layers, batch, fit_weights, rnn_weights):
    """Returns (forward_fn, weight_slab).

    forward_fn(parameters, dl_dz, a_list, weight_slab) -> (output_list, h_final)
    with the PyTorch BPNet.forward semantics (activation = relu).
    """
    node_rev = node[::-1]
    L, B = num_layers, batch
    nbp = len(node_rev) - 1
    assert len(fit_weights) == nbp and len(rnn_weights) == nbp

    # ---- static layout of the two packed (rows, 128) f32 slabs -------------
    cfgs = []
    w_parts = []          # (np array, row offset) into the weight slab
    wr = 0

    def walloc(arr):
        nonlocal wr
        arr = np.asarray(arr, np.float32)
        off = wr
        w_parts.append((arr, off))
        wr += _rup8(arr.shape[0])
        return off

    ar = 0

    def aalloc(nrows):
        nonlocal ar
        off = ar
        ar += _rup8(nrows)
        return off

    off_dldz = aalloc(B)
    for i in range(nbp):
        wfit = np.asarray(fit_weights[i], np.float32)                  # (n, cin)
        wih, whh, bih, bhh = [np.asarray(x, np.float32) for x in rnn_weights[i]]
        n, cin = wfit.shape
        s = node_rev[i + 1]                                            # len(p.T)
        cfgs.append(dict(
            n=n, cin=cin, s=s, dldz=off_dldz,
            wfit=walloc(wfit.T),                                       # (cin, n)
            wih=tuple(walloc(wih[l].T) for l in range(L)),             # (n, n)
            whh=tuple(walloc(whh[l].T) for l in range(L)),             # (n, n)
            b=walloc(bih + bhh),                                       # (L, n)
            a=aalloc(1),
            p=aalloc(s),
        ))
    act_rows = max(_rup8(ar), 8)

    wslab_np = np.zeros((max(_rup8(wr), 8), SLAB_W), np.float32)
    for arr, off in w_parts:
        wslab_np[off:off + arr.shape[0], :arr.shape[1]] = arr
    weight_slab = jnp.asarray(wslab_np)

    # ---- one fused pallas_call for the whole forward -----------------------
    kernel = _make_bpnet_kernel(cfgs, L, B)
    n_last = cfgs[-1]["n"]
    out_shape = tuple(jax.ShapeDtypeStruct((c["s"], B, c["n"]), jnp.float32)
                      for c in cfgs) + (
        jax.ShapeDtypeStruct((L, B, n_last), jnp.float32),)
    vspec = pl.BlockSpec(memory_space=pltpu.MemorySpace.VMEM)
    fused_call = pl.pallas_call(
        kernel,
        out_shape=out_shape,
        in_specs=[vspec, vspec],
        out_specs=tuple(vspec for _ in out_shape),
    )

    @jax.jit
    def forward(parameters, dl_dz, a_list, weight_slab):
        params_rev = list(parameters)[::-1]
        a_rev = list(a_list)[::-1]
        # Pack all per-call activations into one slab: a single DMA into the
        # kernel instead of 5 tiny ones.  (Tiny .at[].set ops fuse under jit.)
        aslab = jnp.zeros((act_rows, SLAB_W), jnp.float32)
        aslab = aslab.at[off_dldz:off_dldz + B, :cfgs[0]["cin"]].set(
            dl_dz.astype(jnp.float32))
        for c, p, a in zip(cfgs, params_rev, a_rev):
            aslab = aslab.at[c["a"]:c["a"] + 1, :c["n"]].set(a.astype(jnp.float32))
            aslab = aslab.at[c["p"]:c["p"] + c["s"], :c["n"]].set(
                p.astype(jnp.float32).T)
        res = fused_call(weight_slab, aslab)
        outs = list(res[:nbp])
        return outs[::-1], res[nbp]

    return forward, weight_slab


# ----------------------------------------------------------------------------
# Pure-JAX reference (direct transcription of the PyTorch semantics)
# ----------------------------------------------------------------------------
def bpnet_forward_ref(parameters, dl_dz, a_list, fit_weights, rnn_weights,
                      num_layers):
    parameters = parameters[::-1]
    a_list = a_list[::-1]
    L = num_layers
    B = dl_dz.shape[0]
    h = jnp.stack([dl_dz] * L, axis=0)
    output = []
    for p, wfit, (wih, whh, bih, bhh), a in zip(parameters, fit_weights,
                                                rnn_weights, a_list):
        n = wfit.shape[0]
        fitted = jnp.einsum('lbc,nc->lbn', h, wfit)            # Linear, no bias
        deriv = (a[0] > 0).astype(jnp.float32)                 # relu'
        dz_da = jnp.diag(deriv)                                # (n, n)
        dl_da = jnp.einsum('lbn,nm->lbm', fitted, dz_da)       # bmm w/ diag
        p_t = p.T                                              # (s, n)
        s = p_t.shape[0]
        hs = [dl_da[l] for l in range(L)]
        outs = []
        for t in range(s):
            x = jnp.broadcast_to(p_t[t][None, :], (B, n))
            for l in range(L):
                h_new = jnp.tanh(x @ wih[l].T + bih[l] + hs[l] @ whh[l].T + bhh[l])
                hs[l] = h_new
                x = h_new
            outs.append(x)
        output.append(jnp.stack(outs, axis=0))
        h = jnp.stack(hs, axis=0)
    return output[::-1], h


# ----------------------------------------------------------------------------
# Deterministic parameter / input construction and test
# ----------------------------------------------------------------------------
if __name__ == "__main__":
    key = jax.random.PRNGKey(0)

    # Original forward net sizes node=[6, 12, 8]; BPNet reverses -> [8, 12, 6]
    node = [6, 12, 8]
    node_rev = node[::-1]            # [8, 12, 6]
    num_layers = 2                   # stacked RNN layers
    B = 4                            # batch

    def nk():
        keys = jax.random.split(nk.key)
        nk.key = keys[0]
        return keys[1]
    nk.key = key

    # FitNet: buffer = [8, 8, 12, 6]; layers: Linear(8->8), Linear(8->12)
    fit_buffer = [node_rev[0]] + node_rev
    fit_weights = []
    for i in range(len(node_rev) - 1):
        fin, fout = fit_buffer[i], fit_buffer[i + 1]
        fit_weights.append(0.3 * jax.random.normal(nk(), (fout, fin), jnp.float32))

    # RNNs: RNN(8,8,2), RNN(12,12,2)  (weights W_ih, W_hh: (L,n,n), biases: (L,n))
    rnn_weights = []
    for i in range(len(node_rev) - 1):
        n = node_rev[i]
        wih = 0.3 * jax.random.normal(nk(), (num_layers, n, n), jnp.float32)
        whh = 0.3 * jax.random.normal(nk(), (num_layers, n, n), jnp.float32)
        bih = 0.1 * jax.random.normal(nk(), (num_layers, n), jnp.float32)
        bhh = 0.1 * jax.random.normal(nk(), (num_layers, n), jnp.float32)
        rnn_weights.append((wih, whh, bih, bhh))

    # Forward-pass arguments (given in original, non-reversed order):
    #   parameters[i] = weight of original layer i, shape (node[i+1], node[i])
    parameters = [jax.random.normal(nk(), (node[i + 1], node[i]), jnp.float32)
                  for i in range(len(node) - 1)]          # [(12,6), (8,12)]
    #   a_list[i] = pre-activation of original layer i, shape (1, node[i+1])
    a_list = [jax.random.normal(nk(), (1, node[i + 1]), jnp.float32)
              for i in range(len(node) - 1)]              # [(1,12), (1,8)]
    dl_dz = jax.random.normal(nk(), (B, node_rev[0]), jnp.float32)   # (4, 8)

    # One-time build: packs all static weights into one (R,128) slab and
    # returns the jitted, single-launch forward.
    bpnet_forward, weight_slab = build_bpnet(node, num_layers, B,
                                             fit_weights, rnn_weights)
    weight_slab = jax.block_until_ready(weight_slab)

    # Run Pallas implementation (whole BPNet forward = ONE fused kernel launch).
    outs, h_final = bpnet_forward(parameters, dl_dz, a_list, weight_slab)
    outs = [jax.block_until_ready(o) for o in outs]
    h_final = jax.block_until_ready(h_final)

    # Verify against pure-JAX reference
    outs_ref, h_ref = bpnet_forward_ref(parameters, dl_dz, a_list,
                                        fit_weights, rnn_weights, num_layers)
    for o, o_ref in zip(outs, outs_ref):
        assert o.shape == o_ref.shape
        assert jnp.allclose(o, o_ref, atol=1e-5, rtol=1e-5), "output mismatch"
    assert jnp.allclose(h_final, h_ref, atol=1e-5, rtol=1e-5), "hidden mismatch"

    print("KERNEL_OK")
</pallas_src>

<mosaic_0001>
module attributes {stable_mosaic.version = 11 : i64} {
  func.func @kernel(%arg0: memref<128x128xf32, #tpu.memory_space<vmem>>, %arg1: memref<48x128xf32, #tpu.memory_space<vmem>>, %arg2: memref<12x4x8xf32, #tpu.memory_space<vmem>>, %arg3: memref<6x4x12xf32, #tpu.memory_space<vmem>>, %arg4: memref<2x4x12xf32, #tpu.memory_space<vmem>>) attributes {dimension_semantics = [], scalar_prefetch = 0 : i64, scratch_operands = 0 : i64, tpu.core_type = #tpu.core_type<tc>} {
    %c0 = arith.constant 0 : index
    %c0_0 = arith.constant 0 : index
    %0 = vector.load %arg1[%c0, %c0_0] : memref<48x128xf32, #tpu.memory_space<vmem>>, vector<4x8xf32>
    %c0_1 = arith.constant 0 : index
    %c0_2 = arith.constant 0 : index
    %1 = vector.load %arg0[%c0_1, %c0_2] : memref<128x128xf32, #tpu.memory_space<vmem>>, vector<8x8xf32>
    %c8 = arith.constant 8 : index
    %c0_3 = arith.constant 0 : index
    %2 = vector.load %arg0[%c8, %c0_3] : memref<128x128xf32, #tpu.memory_space<vmem>>, vector<8x8xf32>
    %c16 = arith.constant 16 : index
    %c0_4 = arith.constant 0 : index
    %3 = vector.load %arg0[%c16, %c0_4] : memref<128x128xf32, #tpu.memory_space<vmem>>, vector<8x8xf32>
    %c24 = arith.constant 24 : index
    %c0_5 = arith.constant 0 : index
    %4 = vector.load %arg0[%c24, %c0_5] : memref<128x128xf32, #tpu.memory_space<vmem>>, vector<8x8xf32>
    %c32 = arith.constant 32 : index
    %c0_6 = arith.constant 0 : index
    %5 = vector.load %arg0[%c32, %c0_6] : memref<128x128xf32, #tpu.memory_space<vmem>>, vector<8x8xf32>
    %c40 = arith.constant 40 : index
    %c0_7 = arith.constant 0 : index
    %6 = vector.load %arg0[%c40, %c0_7] : memref<128x128xf32, #tpu.memory_space<vmem>>, vector<2x8xf32>
    %c8_8 = arith.constant 8 : index
    %c0_9 = arith.constant 0 : index
    %7 = vector.load %arg1[%c8_8, %c0_9] : memref<48x128xf32, #tpu.memory_space<vmem>>, vector<1x8xf32>
    %c16_10 = arith.constant 16 : index
    %c0_11 = arith.constant 0 : index
    %8 = vector.load %arg1[%c16_10, %c0_11] : memref<48x128xf32, #tpu.memory_space<vmem>>, vector<12x8xf32>
    %cst = arith.constant 0.000000e+00 : f32
    %9 = vector.broadcast %cst : f32 to vector<1x8xf32>
    %10 = arith.cmpf ogt, %7, %9 : vector<1x8xf32>
    %11 = arith.extui %10 : vector<1x8xi1> to vector<1x8xi32>
    %12 = arith.sitofp %11 : vector<1x8xi32> to vector<1x8xf32>
    %13 = vector.shape_cast %12 : vector<1x8xf32> to vector<1x8xf32>
    %14 = vector.broadcast %13 : vector<1x8xf32> to vector<4x8xf32>
    %cst_12 = arith.constant dense<0.000000e+00> : vector<4x8xf32>
    %15 = tpu.matmul %0, %1, %cst_12 {dimension_numbers = #tpu.dot_dimension_numbers<[1], [0], [0], [1], [0, 0, 1, 1], [], []>} : vector<4x8xf32>, vector<8x8xf32>, vector<4x8xf32> -> vector<4x8xf32>
    %16 = arith.mulf %15, %14 : vector<4x8xf32>
    %cst_13 = arith.constant dense<0.000000e+00> : vector<12x8xf32>
    %17 = tpu.matmul %8, %2, %cst_13 {dimension_numbers = #tpu.dot_dimension_numbers<[1], [0], [0], [1], [0, 0, 1, 1], [], []>} : vector<12x8xf32>, vector<8x8xf32>, vector<12x8xf32> -> vector<12x8xf32>
    %18 = vector.extract_strided_slice %6 {offsets = [0, 0], sizes = [1, 8], strides = [1, 1]} : vector<2x8xf32> to vector<1x8xf32>
    %19 = vector.broadcast %18 : vector<1x8xf32> to vector<12x8xf32>
    %20 = arith.addf %17, %19 : vector<12x8xf32>
    %21 = vector.extract_strided_slice %6 {offsets = [1, 0], sizes = [1, 8], strides = [1, 1]} : vector<2x8xf32> to vector<1x8xf32>
    %cst_14 = arith.constant dense<0.000000e+00> : vector<4x8xf32>
    %22 = tpu.matmul %16, %4, %cst_14 {dimension_numbers = #tpu.dot_dimension_numbers<[1], [0], [0], [1], [0, 0, 1, 1], [], []>} : vector<4x8xf32>, vector<8x8xf32>, vector<4x8xf32> -> vector<4x8xf32>
    %cst_15 = arith.constant dense<0.000000e+00> : vector<4x8xf32>
    %23 = tpu.matmul %16, %5, %cst_15 {dimension_numbers = #tpu.dot_dimension_numbers<[1], [0], [0], [1], [0, 0, 1, 1], [], []>} : vector<4x8xf32>, vector<8x8xf32>, vector<4x8xf32> -> vector<4x8xf32>
    %24 = vector.extract_strided_slice %20 {offsets = [0, 0], sizes = [1, 8], strides = [1, 1]} : vector<12x8xf32> to vector<1x8xf32>
    %25 = vector.broadcast %24 : vector<1x8xf32> to vector<4x8xf32>
    %26 = arith.addf %22, %25 : vector<4x8xf32>
    %27 = math.tanh %26 : vector<4x8xf32>
    %cst_16 = arith.constant dense<0.000000e+00> : vector<4x8xf32>
    %28 = tpu.matmul %27, %3, %cst_16 {dimension_numbers = #tpu.dot_dimension_numbers<[1], [0], [0], [1], [0, 0, 1, 1], [], []>} : vector<4x8xf32>, vector<8x8xf32>, vector<4x8xf32> -> vector<4x8xf32>
    %29 = arith.addf %28, %23 : vector<4x8xf32>
    %30 = vector.broadcast %21 : vector<1x8xf32> to vector<4x8xf32>
    %31 = arith.addf %29, %30 : vector<4x8xf32>
    %32 = math.tanh %31 : vector<4x8xf32>
    %c0_17 = arith.constant 0 : index
    %c0_18 = arith.constant 0 : index
    %c0_19 = arith.constant 0 : index
    %33 = vector.load %arg2[%c0_17, %c0_18, %c0_19] : memref<12x4x8xf32, #tpu.memory_space<vmem>>, vector<1x4x8xf32>
    %34 = vector.shape_cast %33 : vector<1x4x8xf32> to vector<4x8xf32>
    %35 = vector.shape_cast %32 : vector<4x8xf32> to vector<1x4x8xf32>
    tpu.vector_store %arg2[%c0_17, %c0_18, %c0_19], %35 {strides = array<i32>} : memref<12x4x8xf32, #tpu.memory_space<vmem>>, vector<1x4x8xf32>,
    %cst_20 = arith.constant dense<0.000000e+00> : vector<4x8xf32>
    %36 = tpu.matmul %27, %4, %cst_20 {dimension_numbers = #tpu.dot_dimension_numbers<[1], [0], [0], [1], [0, 0, 1, 1], [], []>} : vector<4x8xf32>, vector<8x8xf32>, vector<4x8xf32> -> vector<4x8xf32>
    %cst_21 = arith.constant dense<0.000000e+00> : vector<4x8xf32>
    %37 = tpu.matmul %32, %5, %cst_21 {dimension_numbers = #tpu.dot_dimension_numbers<[1], [0], [0], [1], [0, 0, 1, 1], [], []>} : vector<4x8xf32>, vector<8x8xf32>, vector<4x8xf32> -> vector<4x8xf32>
    %38 = vector.extract_strided_slice %20 {offsets = [1, 0], sizes = [1, 8], strides = [1, 1]} : vector<12x8xf32> to vector<1x8xf32>
    %39 = vector.broadcast %38 : vector<1x8xf32> to vector<4x8xf32>
    %40 = arith.addf %36, %39 : vector<4x8xf32>
    %41 = math.tanh %40 : vector<4x8xf32>
    %cst_22 = arith.constant dense<0.000000e+00> : vector<4x8xf32>
    %42 = tpu.matmul %41, %3, %cst_22 {dimension_numbers = #tpu.dot_dimension_numbers<[1], [0], [0], [1], [0, 0, 1, 1], [], []>} : vector<4x8xf32>, vector<8x8xf32>, vector<4x8xf32> -> vector<4x8xf32>
    %43 = arith.addf %42, %37 : vector<4x8xf32>
    %44 = vector.broadcast %21 : vector<1x8xf32> to vector<4x8xf32>
    %45 = arith.addf %43, %44 : vector<4x8xf32>
    %46 = math.tanh %45 : vector<4x8xf32>
    %c1 = arith.constant 1 : index
    %c0_23 = arith.constant 0 : index
    %c0_24 = arith.constant 0 : index
    %47 = vector.load %arg2[%c1, %c0_23, %c0_24] : memref<12x4x8xf32, #tpu.memory_space<vmem>>, vector<1x4x8xf32>
    %48 = vector.shape_cast %47 : vector<1x4x8xf32> to vector<4x8xf32>
    %49 = vector.shape_cast %46 : vector<4x8xf32> to vector<1x4x8xf32>
    tpu.vector_store %arg2[%c1, %c0_23, %c0_24], %49 {strides = array<i32>} : memref<12x4x8xf32, #tpu.memory_space<vmem>>, vector<1x4x8xf32>,
    %cst_25 = arith.constant dense<0.000000e+00> : vector<4x8xf32>
    %50 = tpu.matmul %41, %4, %cst_25 {dimension_numbers = #tpu.dot_dimension_numbers<[1], [0], [0], [1], [0, 0, 1, 1], [], []>} : vector<4x8xf32>, vector<8x8xf32>, vector<4x8xf32> -> vector<4x8xf32>
    %cst_26 = arith.constant dense<0.000000e+00> : vector<4x8xf32>
    %51 = tpu.matmul %46, %5, %cst_26 {dimension_numbers = #tpu.dot_dimension_numbers<[1], [0], [0], [1], [0, 0, 1, 1], [], []>} : vector<4x8xf32>, vector<8x8xf32>, vector<4x8xf32> -> vector<4x8xf32>
    %52 = vector.extract_strided_slice %20 {offsets = [2, 0], sizes = [1, 8], strides = [1, 1]} : vector<12x8xf32> to vector<1x8xf32>
    %53 = vector.broadcast %52 : vector<1x8xf32> to vector<4x8xf32>
    %54 = arith.addf %50, %53 : vector<4x8xf32>
    %55 = math.tanh %54 : vector<4x8xf32>
    %cst_27 = arith.constant dense<0.000000e+00> : vector<4x8xf32>
    %56 = tpu.matmul %55, %3, %cst_27 {dimension_numbers = #tpu.dot_dimension_numbers<[1], [0], [0], [1], [0, 0, 1, 1], [], []>} : vector<4x8xf32>, vector<8x8xf32>, vector<4x8xf32> -> vector<4x8xf32>
    %57 = arith.addf %56, %51 : vector<4x8xf32>
    %58 = vector.broadcast %21 : vector<1x8xf32> to vector<4x8xf32>
    %59 = arith.addf %57, %58 : vector<4x8xf32>
    %60 = math.tanh %59 : vector<4x8xf32>
    %c2 = arith.constant 2 : index
    %c0_28 = arith.constant 0 : index
    %c0_29 = arith.constant 0 : index
    %61 = vector.load %arg2[%c2, %c0_28, %c0_29] : memref<12x4x8xf32, #tpu.memory_space<vmem>>, vector<1x4x8xf32>
    %62 = vector.shape_cast %61 : vector<1x4x8xf32> to vector<4x8xf32>
    %63 = vector.shape_cast %60 : vector<4x8xf32> to vector<1x4x8xf32>
    tpu.vector_store %arg2[%c2, %c0_28, %c0_29], %63 {strides = array<i32>} : memref<12x4x8xf32, #tpu.memory_space<vmem>>, vector<1x4x8xf32>,
    %cst_30 = arith.constant dense<0.000000e+00> : vector<4x8xf32>
    %64 = tpu.matmul %55, %4, %cst_30 {dimension_numbers = #tpu.dot_dimension_numbers<[1], [0], [0], [1], [0, 0, 1, 1], [], []>} : vector<4x8xf32>, vector<8x8xf32>, vector<4x8xf32> -> vector<4x8xf32>
    %cst_31 = arith.constant dense<0.000000e+00> : vector<4x8xf32>
    %65 = tpu.matmul %60, %5, %cst_31 {dimension_numbers = #tpu.dot_dimension_numbers<[1], [0], [0], [1], [0, 0, 1, 1], [], []>} : vector<4x8xf32>, vector<8x8xf32>, vector<4x8xf32> -> vector<4x8xf32>
    %66 = vector.extract_strided_slice %20 {offsets = [3, 0], sizes = [1, 8], strides = [1, 1]} : vector<12x8xf32> to vector<1x8xf32>
    %67 = vector.broadcast %66 : vector<1x8xf32> to vector<4x8xf32>
    %68 = arith.addf %64, %67 : vector<4x8xf32>
    %69 = math.tanh %68 : vector<4x8xf32>
    %cst_32 = arith.constant dense<0.000000e+00> : vector<4x8xf32>
    %70 = tpu.matmul %69, %3, %cst_32 {dimension_numbers = #tpu.dot_dimension_numbers<[1], [0], [0], [1], [0, 0, 1, 1], [], []>} : vector<4x8xf32>, vector<8x8xf32>, vector<4x8xf32> -> vector<4x8xf32>
    %71 = arith.addf %70, %65 : vector<4x8xf32>
    %72 = vector.broadcast %21 : vector<1x8xf32> to vector<4x8xf32>
    %73 = arith.addf %71, %72 : vector<4x8xf32>
    %74 = math.tanh %73 : vector<4x8xf32>
    %c3 = arith.constant 3 : index
    %c0_33 = arith.constant 0 : index
    %c0_34 = arith.constant 0 : index
    %75 = vector.load %arg2[%c3, %c0_33, %c0_34] : memref<12x4x8xf32, #tpu.memory_space<vmem>>, vector<1x4x8xf32>
    %76 = vector.shape_cast %75 : vector<1x4x8xf32> to vector<4x8xf32>
    %77 = vector.shape_cast %74 : vector<4x8xf32> to vector<1x4x8xf32>
    tpu.vector_store %arg2[%c3, %c0_33, %c0_34], %77 {strides = array<i32>} : memref<12x4x8xf32, #tpu.memory_space<vmem>>, vector<1x4x8xf32>,
    %cst_35 = arith.constant dense<0.000000e+00> : vector<4x8xf32>
    %78 = tpu.matmul %69, %4, %cst_35 {dimension_numbers = #tpu.dot_dimension_numbers<[1], [0], [0], [1], [0, 0, 1, 1], [], []>} : vector<4x8xf32>, vector<8x8xf32>, vector<4x8xf32> -> vector<4x8xf32>
    %cst_36 = arith.constant dense<0.000000e+00> : vector<4x8xf32>
    %79 = tpu.matmul %74, %5, %cst_36 {dimension_numbers = #tpu.dot_dimension_numbers<[1], [0], [0], [1], [0, 0, 1, 1], [], []>} : vector<4x8xf32>, vector<8x8xf32>, vector<4x8xf32> -> vector<4x8xf32>
    %80 = vector.extract_strided_slice %20 {offsets = [4, 0], sizes = [1, 8], strides = [1, 1]} : vector<12x8xf32> to vector<1x8xf32>
    %81 = vector.broadcast %80 : vector<1x8xf32> to vector<4x8xf32>
    %82 = arith.addf %78, %81 : vector<4x8xf32>
    %83 = math.tanh %82 : vector<4x8xf32>
    %cst_37 = arith.constant dense<0.000000e+00> : vector<4x8xf32>
    %84 = tpu.matmul %83, %3, %cst_37 {dimension_numbers = #tpu.dot_dimension_numbers<[1], [0], [0], [1], [0, 0, 1, 1], [], []>} : vector<4x8xf32>, vector<8x8xf32>, vector<4x8xf32> -> vector<4x8xf32>
    %85 = arith.addf %84, %79 : vector<4x8xf32>
    %86 = vector.broadcast %21 : vector<1x8xf32> to vector<4x8xf32>
    %87 = arith.addf %85, %86 : vector<4x8xf32>
    %88 = math.tanh %87 : vector<4x8xf32>
    %c4 = arith.constant 4 : index
    %c0_38 = arith.constant 0 : index
    %c0_39 = arith.constant 0 : index
    %89 = vector.load %arg2[%c4, %c0_38, %c0_39] : memref<12x4x8xf32, #tpu.memory_space<vmem>>, vector<1x4x8xf32>
    %90 = vector.shape_cast %89 : vector<1x4x8xf32> to vector<4x8xf32>
    %91 = vector.shape_cast %88 : vector<4x8xf32> to vector<1x4x8xf32>
    tpu.vector_store %arg2[%c4, %c0_38, %c0_39], %91 {strides = array<i32>} : memref<12x4x8xf32, #tpu.memory_space<vmem>>, vector<1x4x8xf32>,
    %cst_40 = arith.constant dense<0.000000e+00> : vector<4x8xf32>
    %92 = tpu.matmul %83, %4, %cst_40 {dimension_numbers = #tpu.dot_dimension_numbers<[1], [0], [0], [1], [0, 0, 1, 1], [], []>} : vector<4x8xf32>, vector<8x8xf32>, vector<4x8xf32> -> vector<4x8xf32>
    %cst_41 = arith.constant dense<0.000000e+00> : vector<4x8xf32>
    %93 = tpu.matmul %88, %5, %cst_41 {dimension_numbers = #tpu.dot_dimension_numbers<[1], [0], [0], [1], [0, 0, 1, 1], [], []>} : vector<4x8xf32>, vector<8x8xf32>, vector<4x8xf32> -> vector<4x8xf32>
    %94 = vector.extract_strided_slice %20 {offsets = [5, 0], sizes = [1, 8], strides = [1, 1]} : vector<12x8xf32> to vector<1x8xf32>
    %95 = vector.broadcast %94 : vector<1x8xf32> to vector<4x8xf32>
    %96 = arith.addf %92, %95 : vector<4x8xf32>
    %97 = math.tanh %96 : vector<4x8xf32>
    %cst_42 = arith.constant dense<0.000000e+00> : vector<4x8xf32>
    %98 = tpu.matmul %97, %3, %cst_42 {dimension_numbers = #tpu.dot_dimension_numbers<[1], [0], [0], [1], [0, 0, 1, 1], [], []>} : vector<4x8xf32>, vector<8x8xf32>, vector<4x8xf32> -> vector<4x8xf32>
    %99 = arith.addf %98, %93 : vector<4x8xf32>
    %100 = vector.broadcast %21 : vector<1x8xf32> to vector<4x8xf32>
    %101 = arith.addf %99, %100 : vector<4x8xf32>
    %102 = math.tanh %101 : vector<4x8xf32>
    %c5 = arith.constant 5 : index
    %c0_43 = arith.constant 0 : index
    %c0_44 = arith.constant 0 : index
    %103 = vector.load %arg2[%c5, %c0_43, %c0_44] : memref<12x4x8xf32, #tpu.memory_space<vmem>>, vector<1x4x8xf32>
    %104 = vector.shape_cast %103 : vector<1x4x8xf32> to vector<4x8xf32>
    %105 = vector.shape_cast %102 : vector<4x8xf32> to vector<1x4x8xf32>
    tpu.vector_store %arg2[%c5, %c0_43, %c0_44], %105 {strides = array<i32>} : memref<12x4x8xf32, #tpu.memory_space<vmem>>, vector<1x4x8xf32>,
    %cst_45 = arith.constant dense<0.000000e+00> : vector<4x8xf32>
    %106 = tpu.matmul %97, %4, %cst_45 {dimension_numbers = #tpu.dot_dimension_numbers<[1], [0], [0], [1], [0, 0, 1, 1], [], []>} : vector<4x8xf32>, vector<8x8xf32>, vector<4x8xf32> -> vector<4x8xf32>
    %cst_46 = arith.constant dense<0.000000e+00> : vector<4x8xf32>
    %107 = tpu.matmul %102, %5, %cst_46 {dimension_numbers = #tpu.dot_dimension_numbers<[1], [0], [0], [1], [0, 0, 1, 1], [], []>} : vector<4x8xf32>, vector<8x8xf32>, vector<4x8xf32> -> vector<4x8xf32>
    %108 = vector.extract_strided_slice %20 {offsets = [6, 0], sizes = [1, 8], strides = [1, 1]} : vector<12x8xf32> to vector<1x8xf32>
    %109 = vector.broadcast %108 : vector<1x8xf32> to vector<4x8xf32>
    %110 = arith.addf %106, %109 : vector<4x8xf32>
    %111 = math.tanh %110 : vector<4x8xf32>
    %cst_47 = arith.constant dense<0.000000e+00> : vector<4x8xf32>
    %112 = tpu.matmul %111, %3, %cst_47 {dimension_numbers = #tpu.dot_dimension_numbers<[1], [0], [0], [1], [0, 0, 1, 1], [], []>} : vector<4x8xf32>, vector<8x8xf32>, vector<4x8xf32> -> vector<4x8xf32>
    %113 = arith.addf %112, %107 : vector<4x8xf32>
    %114 = vector.broadcast %21 : vector<1x8xf32> to vector<4x8xf32>
    %115 = arith.addf %113, %114 : vector<4x8xf32>
    %116 = math.tanh %115 : vector<4x8xf32>
    %c6 = arith.constant 6 : index
    %c0_48 = arith.constant 0 : index
    %c0_49 = arith.constant 0 : index
    %117 = vector.load %arg2[%c6, %c0_48, %c0_49] : memref<12x4x8xf32, #tpu.memory_space<vmem>>, vector<1x4x8xf32>
    %118 = vector.shape_cast %117 : vector<1x4x8xf32> to vector<4x8xf32>
    %119 = vector.shape_cast %116 : vector<4x8xf32> to vector<1x4x8xf32>
    tpu.vector_store %arg2[%c6, %c0_48, %c0_49], %119 {strides = array<i32>} : memref<12x4x8xf32, #tpu.memory_space<vmem>>, vector<1x4x8xf32>,
    %cst_50 = arith.constant dense<0.000000e+00> : vector<4x8xf32>
    %120 = tpu.matmul %111, %4, %cst_50 {dimension_numbers = #tpu.dot_dimension_numbers<[1], [0], [0], [1], [0, 0, 1, 1], [], []>} : vector<4x8xf32>, vector<8x8xf32>, vector<4x8xf32> -> vector<4x8xf32>
    %cst_51 = arith.constant dense<0.000000e+00> : vector<4x8xf32>
    %121 = tpu.matmul %116, %5, %cst_51 {dimension_numbers = #tpu.dot_dimension_numbers<[1], [0], [0], [1], [0, 0, 1, 1], [], []>} : vector<4x8xf32>, vector<8x8xf32>, vector<4x8xf32> -> vector<4x8xf32>
    %122 = vector.extract_strided_slice %20 {offsets = [7, 0], sizes = [1, 8], strides = [1, 1]} : vector<12x8xf32> to vector<1x8xf32>
    %123 = vector.broadcast %122 : vector<1x8xf32> to vector<4x8xf32>
    %124 = arith.addf %120, %123 : vector<4x8xf32>
    %125 = math.tanh %124 : vector<4x8xf32>
    %cst_52 = arith.constant dense<0.000000e+00> : vector<4x8xf32>
    %126 = tpu.matmul %125, %3, %cst_52 {dimension_numbers = #tpu.dot_dimension_numbers<[1], [0], [0], [1], [0, 0, 1, 1], [], []>} : vector<4x8xf32>, vector<8x8xf32>, vector<4x8xf32> -> vector<4x8xf32>
    %127 = arith.addf %126, %121 : vector<4x8xf32>
    %128 = vector.broadcast %21 : vector<1x8xf32> to vector<4x8xf32>
    %129 = arith.addf %127, %128 : vector<4x8xf32>
    %130 = math.tanh %129 : vector<4x8xf32>
    %c7 = arith.constant 7 : index
    %c0_53 = arith.constant 0 : index
    %c0_54 = arith.constant 0 : index
    %131 = vector.load %arg2[%c7, %c0_53, %c0_54] : memref<12x4x8xf32, #tpu.memory_space<vmem>>, vector<1x4x8xf32>
    %132 = vector.shape_cast %131 : vector<1x4x8xf32> to vector<4x8xf32>
    %133 = vector.shape_cast %130 : vector<4x8xf32> to vector<1x4x8xf32>
    tpu.vector_store %arg2[%c7, %c0_53, %c0_54], %133 {strides = array<i32>} : memref<12x4x8xf32, #tpu.memory_space<vmem>>, vector<1x4x8xf32>,
    %cst_55 = arith.constant dense<0.000000e+00> : vector<4x8xf32>
    %134 = tpu.matmul %125, %4, %cst_55 {dimension_numbers = #tpu.dot_dimension_numbers<[1], [0], [0], [1], [0, 0, 1, 1], [], []>} : vector<4x8xf32>, vector<8x8xf32>, vector<4x8xf32> -> vector<4x8xf32>
    %cst_56 = arith.constant dense<0.000000e+00> : vector<4x8xf32>
    %135 = tpu.matmul %130, %5, %cst_56 {dimension_numbers = #tpu.dot_dimension_numbers<[1], [0], [0], [1], [0, 0, 1, 1], [], []>} : vector<4x8xf32>, vector<8x8xf32>, vector<4x8xf32> -> vector<4x8xf32>
    %136 = vector.extract_strided_slice %20 {offsets = [8, 0], sizes = [1, 8], strides = [1, 1]} : vector<12x8xf32> to vector<1x8xf32>
    %137 = vector.broadcast %136 : vector<1x8xf32> to vector<4x8xf32>
    %138 = arith.addf %134, %137 : vector<4x8xf32>
    %139 = math.tanh %138 : vector<4x8xf32>
    %cst_57 = arith.constant dense<0.000000e+00> : vector<4x8xf32>
    %140 = tpu.matmul %139, %3, %cst_57 {dimension_numbers = #tpu.dot_dimension_numbers<[1], [0], [0], [1], [0, 0, 1, 1], [], []>} : vector<4x8xf32>, vector<8x8xf32>, vector<4x8xf32> -> vector<4x8xf32>
    %141 = arith.addf %140, %135 : vector<4x8xf32>
    %142 = vector.broadcast %21 : vector<1x8xf32> to vector<4x8xf32>
    %143 = arith.addf %141, %142 : vector<4x8xf32>
    %144 = math.tanh %143 : vector<4x8xf32>
    %c8_58 = arith.constant 8 : index
    %c0_59 = arith.constant 0 : index
    %c0_60 = arith.constant 0 : index
    %145 = vector.load %arg2[%c8_58, %c0_59, %c0_60] : memref<12x4x8xf32, #tpu.memory_space<vmem>>, vector<1x4x8xf32>
    %146 = vector.shape_cast %145 : vector<1x4x8xf32> to vector<4x8xf32>
    %147 = vector.shape_cast %144 : vector<4x8xf32> to vector<1x4x8xf32>
    tpu.vector_store %arg2[%c8_58, %c0_59, %c0_60], %147 {strides = array<i32>} : memref<12x4x8xf32, #tpu.memory_space<vmem>>, vector<1x4x8xf32>,
    %cst_61 = arith.constant dense<0.000000e+00> : vector<4x8xf32>
    %148 = tpu.matmul %139, %4, %cst_61 {dimension_numbers = #tpu.dot_dimension_numbers<[1], [0], [0], [1], [0, 0, 1, 1], [], []>} : vector<4x8xf32>, vector<8x8xf32>, vector<4x8xf32> -> vector<4x8xf32>
    %cst_62 = arith.constant dense<0.000000e+00> : vector<4x8xf32>
    %149 = tpu.matmul %144, %5, %cst_62 {dimension_numbers = #tpu.dot_dimension_numbers<[1], [0], [0], [1], [0, 0, 1, 1], [], []>} : vector<4x8xf32>, vector<8x8xf32>, vector<4x8xf32> -> vector<4x8xf32>
    %150 = vector.extract_strided_slice %20 {offsets = [9, 0], sizes = [1, 8], strides = [1, 1]} : vector<12x8xf32> to vector<1x8xf32>
    %151 = vector.broadcast %150 : vector<1x8xf32> to vector<4x8xf32>
    %152 = arith.addf %148, %151 : vector<4x8xf32>
    %153 = math.tanh %152 : vector<4x8xf32>
    %cst_63 = arith.constant dense<0.000000e+00> : vector<4x8xf32>
    %154 = tpu.matmul %153, %3, %cst_63 {dimension_numbers = #tpu.dot_dimension_numbers<[1], [0], [0], [1], [0, 0, 1, 1], [], []>} : vector<4x8xf32>, vector<8x8xf32>, vector<4x8xf32> -> vector<4x8xf32>
    %155 = arith.addf %154, %149 : vector<4x8xf32>
    %156 = vector.broadcast %21 : vector<1x8xf32> to vector<4x8xf32>
    %157 = arith.addf %155, %156 : vector<4x8xf32>
    %158 = math.tanh %157 : vector<4x8xf32>
    %c9 = arith.constant 9 : index
    %c0_64 = arith.constant 0 : index
    %c0_65 = arith.constant 0 : index
    %159 = vector.load %arg2[%c9, %c0_64, %c0_65] : memref<12x4x8xf32, #tpu.memory_space<vmem>>, vector<1x4x8xf32>
    %160 = vector.shape_cast %159 : vector<1x4x8xf32> to vector<4x8xf32>
    %161 = vector.shape_cast %158 : vector<4x8xf32> to vector<1x4x8xf32>
    tpu.vector_store %arg2[%c9, %c0_64, %c0_65], %161 {strides = array<i32>} : memref<12x4x8xf32, #tpu.memory_space<vmem>>, vector<1x4x8xf32>,
    %cst_66 = arith.constant dense<0.000000e+00> : vector<4x8xf32>
    %162 = tpu.matmul %153, %4, %cst_66 {dimension_numbers = #tpu.dot_dimension_numbers<[1], [0], [0], [1], [0, 0, 1, 1], [], []>} : vector<4x8xf32>, vector<8x8xf32>, vector<4x8xf32> -> vector<4x8xf32>
    %cst_67 = arith.constant dense<0.000000e+00> : vector<4x8xf32>
    %163 = tpu.matmul %158, %5, %cst_67 {dimension_numbers = #tpu.dot_dimension_numbers<[1], [0], [0], [1], [0, 0, 1, 1], [], []>} : vector<4x8xf32>, vector<8x8xf32>, vector<4x8xf32> -> vector<4x8xf32>
    %164 = vector.extract_strided_slice %20 {offsets = [10, 0], sizes = [1, 8], strides = [1, 1]} : vector<12x8xf32> to vector<1x8xf32>
    %165 = vector.broadcast %164 : vector<1x8xf32> to vector<4x8xf32>
    %166 = arith.addf %162, %165 : vector<4x8xf32>
    %167 = math.tanh %166 : vector<4x8xf32>
    %cst_68 = arith.constant dense<0.000000e+00> : vector<4x8xf32>
    %168 = tpu.matmul %167, %3, %cst_68 {dimension_numbers = #tpu.dot_dimension_numbers<[1], [0], [0], [1], [0, 0, 1, 1], [], []>} : vector<4x8xf32>, vector<8x8xf32>, vector<4x8xf32> -> vector<4x8xf32>
    %169 = arith.addf %168, %163 : vector<4x8xf32>
    %170 = vector.broadcast %21 : vector<1x8xf32> to vector<4x8xf32>
    %171 = arith.addf %169, %170 : vector<4x8xf32>
    %172 = math.tanh %171 : vector<4x8xf32>
    %c10 = arith.constant 10 : index
    %c0_69 = arith.constant 0 : index
    %c0_70 = arith.constant 0 : index
    %173 = vector.load %arg2[%c10, %c0_69, %c0_70] : memref<12x4x8xf32, #tpu.memory_space<vmem>>, vector<1x4x8xf32>
    %174 = vector.shape_cast %173 : vector<1x4x8xf32> to vector<4x8xf32>
    %175 = vector.shape_cast %172 : vector<4x8xf32> to vector<1x4x8xf32>
    tpu.vector_store %arg2[%c10, %c0_69, %c0_70], %175 {strides = array<i32>} : memref<12x4x8xf32, #tpu.memory_space<vmem>>, vector<1x4x8xf32>,
    %cst_71 = arith.constant dense<0.000000e+00> : vector<4x8xf32>
    %176 = tpu.matmul %167, %4, %cst_71 {dimension_numbers = #tpu.dot_dimension_numbers<[1], [0], [0], [1], [0, 0, 1, 1], [], []>} : vector<4x8xf32>, vector<8x8xf32>, vector<4x8xf32> -> vector<4x8xf32>
    %cst_72 = arith.constant dense<0.000000e+00> : vector<4x8xf32>
    %177 = tpu.matmul %172, %5, %cst_72 {dimension_numbers = #tpu.dot_dimension_numbers<[1], [0], [0], [1], [0, 0, 1, 1], [], []>} : vector<4x8xf32>, vector<8x8xf32>, vector<4x8xf32> -> vector<4x8xf32>
    %178 = vector.extract_strided_slice %20 {offsets = [11, 0], sizes = [1, 8], strides = [1, 1]} : vector<12x8xf32> to vector<1x8xf32>
    %179 = vector.broadcast %178 : vector<1x8xf32> to vector<4x8xf32>
    %180 = arith.addf %176, %179 : vector<4x8xf32>
    %181 = math.tanh %180 : vector<4x8xf32>
    %cst_73 = arith.constant dense<0.000000e+00> : vector<4x8xf32>
    %182 = tpu.matmul %181, %3, %cst_73 {dimension_numbers = #tpu.dot_dimension_numbers<[1], [0], [0], [1], [0, 0, 1, 1], [], []>} : vector<4x8xf32>, vector<8x8xf32>, vector<4x8xf32> -> vector<4x8xf32>
    %183 = arith.addf %182, %177 : vector<4x8xf32>
    %184 = vector.broadcast %21 : vector<1x8xf32> to vector<4x8xf32>
    %185 = arith.addf %183, %184 : vector<4x8xf32>
    %186 = math.tanh %185 : vector<4x8xf32>
    %c11 = arith.constant 11 : index
    %c0_74 = arith.constant 0 : index
    %c0_75 = arith.constant 0 : index
    %187 = vector.load %arg2[%c11, %c0_74, %c0_75] : memref<12x4x8xf32, #tpu.memory_space<vmem>>, vector<1x4x8xf32>
    %188 = vector.shape_cast %187 : vector<1x4x8xf32> to vector<4x8xf32>
    %189 = vector.shape_cast %186 : vector<4x8xf32> to vector<1x4x8xf32>
    tpu.vector_store %arg2[%c11, %c0_74, %c0_75], %189 {strides = array<i32>} : memref<12x4x8xf32, #tpu.memory_space<vmem>>, vector<1x4x8xf32>,
    %c48 = arith.constant 48 : index
    %c0_76 = arith.constant 0 : index
    %190 = vector.load %arg0[%c48, %c0_76] : memref<128x128xf32, #tpu.memory_space<vmem>>, vector<8x12xf32>
    %c56 = arith.constant 56 : index
    %c0_77 = arith.constant 0 : index
    %191 = vector.load %arg0[%c56, %c0_77] : memref<128x128xf32, #tpu.memory_space<vmem>>, vector<12x12xf32>
    %c72 = arith.constant 72 : index
    %c0_78 = arith.constant 0 : index
    %192 = vector.load %arg0[%c72, %c0_78] : memref<128x128xf32, #tpu.memory_space<vmem>>, vector<12x12xf32>
    %c88 = arith.constant 88 : index
    %c0_79 = arith.constant 0 : index
    %193 = vector.load %arg0[%c88, %c0_79] : memref<128x128xf32, #tpu.memory_space<vmem>>, vector<12x12xf32>
    %c104 = arith.constant 104 : index
    %c0_80 = arith.constant 0 : index
    %194 = vector.load %arg0[%c104, %c0_80] : memref<128x128xf32, #tpu.memory_space<vmem>>, vector<12x12xf32>
    %c120 = arith.constant 120 : index
    %c0_81 = arith.constant 0 : index
    %195 = vector.load %arg0[%c120, %c0_81] : memref<128x128xf32, #tpu.memory_space<vmem>>, vector<2x12xf32>
    %c32_82 = arith.constant 32 : index
    %c0_83 = arith.constant 0 : index
    %196 = vector.load %arg1[%c32_82, %c0_83] : memref<48x128xf32, #tpu.memory_space<vmem>>, vector<1x12xf32>
    %c40_84 = arith.constant 40 : index
    %c0_85 = arith.constant 0 : index
    %197 = vector.load %arg1[%c40_84, %c0_85] : memref<48x128xf32, #tpu.memory_space<vmem>>, vector<6x12xf32>
    %cst_86 = arith.constant 0.000000e+00 : f32
    %198 = vector.broadcast %cst_86 : f32 to vector<1x12xf32>
    %199 = arith.cmpf ogt, %196, %198 : vector<1x12xf32>
    %200 = arith.extui %199 : vector<1x12xi1> to vector<1x12xi32>
    %201 = arith.sitofp %200 : vector<1x12xi32> to vector<1x12xf32>
    %202 = vector.shape_cast %201 : vector<1x12xf32> to vector<1x12xf32>
    %203 = vector.broadcast %202 : vector<1x12xf32> to vector<4x12xf32>
    %cst_87 = arith.constant dense<0.000000e+00> : vector<4x12xf32>
    %204 = tpu.matmul %181, %190, %cst_87 {dimension_numbers = #tpu.dot_dimension_numbers<[1], [0], [0], [1], [0, 0, 1, 1], [], []>} : vector<4x8xf32>, vector<8x12xf32>, vector<4x12xf32> -> vector<4x12xf32>
    %205 = arith.mulf %204, %203 : vector<4x12xf32>
    %cst_88 = arith.constant dense<0.000000e+00> : vector<4x12xf32>
    %206 = tpu.matmul %186, %190, %cst_88 {dimension_numbers = #tpu.dot_dimension_numbers<[1], [0], [0], [1], [0, 0, 1, 1], [], []>} : vector<4x8xf32>, vector<8x12xf32>, vector<4x12xf32> -> vector<4x12xf32>
    %207 = arith.mulf %206, %203 : vector<4x12xf32>
    %cst_89 = arith.constant dense<0.000000e+00> : vector<6x12xf32>
    %208 = tpu.matmul %197, %191, %cst_89 {dimension_numbers = #tpu.dot_dimension_numbers<[1], [0], [0], [1], [0, 0, 1, 1], [], []>} : vector<6x12xf32>, vector<12x12xf32>, vector<6x12xf32> -> vector<6x12xf32>
    %209 = vector.extract_strided_slice %195 {offsets = [0, 0], sizes = [1, 12], strides = [1, 1]} : vector<2x12xf32> to vector<1x12xf32>
    %210 = vector.broadcast %209 : vector<1x12xf32> to vector<6x12xf32>
    %211 = arith.addf %208, %210 : vector<6x12xf32>
    %212 = vector.extract_strided_slice %195 {offsets = [1, 0], sizes = [1, 12], strides = [1, 1]} : vector<2x12xf32> to vector<1x12xf32>
    %cst_90 = arith.constant dense<0.000000e+00> : vector<4x12xf32>
    %213 = tpu.matmul %205, %193, %cst_90 {dimension_numbers = #tpu.dot_dimension_numbers<[1], [0], [0], [1], [0, 0, 1, 1], [], []>} : vector<4x12xf32>, vector<12x12xf32>, vector<4x12xf32> -> vector<4x12xf32>
    %cst_91 = arith.constant dense<0.000000e+00> : vector<4x12xf32>
    %214 = tpu.matmul %207, %194, %cst_91 {dimension_numbers = #tpu.dot_dimension_numbers<[1], [0], [0], [1], [0, 0, 1, 1], [], []>} : vector<4x12xf32>, vector<12x12xf32>, vector<4x12xf32> -> vector<4x12xf32>
    %215 = vector.extract_strided_slice %211 {offsets = [0, 0], sizes = [1, 12], strides = [1, 1]} : vector<6x12xf32> to vector<1x12xf32>
    %216 = vector.broadcast %215 : vector<1x12xf32> to vector<4x12xf32>
    %217 = arith.addf %213, %216 : vector<4x12xf32>
    %218 = math.tanh %217 : vector<4x12xf32>
    %cst_92 = arith.constant dense<0.000000e+00> : vector<4x12xf32>
    %219 = tpu.matmul %218, %192, %cst_92 {dimension_numbers = #tpu.dot_dimension_numbers<[1], [0], [0], [1], [0, 0, 1, 1], [], []>} : vector<4x12xf32>, vector<12x12xf32>, vector<4x12xf32> -> vector<4x12xf32>
    %220 = arith.addf %219, %214 : vector<4x12xf32>
    %221 = vector.broadcast %212 : vector<1x12xf32> to vector<4x12xf32>
    %222 = arith.addf %220, %221 : vector<4x12xf32>
    %223 = math.tanh %222 : vector<4x12xf32>
    %c0_93 = arith.constant 0 : index
    %c0_94 = arith.constant 0 : index
    %c0_95 = arith.constant 0 : index
    %224 = vector.load %arg3[%c0_93, %c0_94, %c0_95] : memref<6x4x12xf32, #tpu.memory_space<vmem>>, vector<1x4x12xf32>
    %225 = vector.shape_cast %224 : vector<1x4x12xf32> to vector<4x12xf32>
    %226 = vector.shape_cast %223 : vector<4x12xf32> to vector<1x4x12xf32>
    tpu.vector_store %arg3[%c0_93, %c0_94, %c0_95], %226 {strides = array<i32>} : memref<6x4x12xf32, #tpu.memory_space<vmem>>, vector<1x4x12xf32>,
    %cst_96 = arith.constant dense<0.000000e+00> : vector<4x12xf32>
    %227 = tpu.matmul %218, %193, %cst_96 {dimension_numbers = #tpu.dot_dimension_numbers<[1], [0], [0], [1], [0, 0, 1, 1], [], []>} : vector<4x12xf32>, vector<12x12xf32>, vector<4x12xf32> -> vector<4x12xf32>
    %cst_97 = arith.constant dense<0.000000e+00> : vector<4x12xf32>
    %228 = tpu.matmul %223, %194, %cst_97 {dimension_numbers = #tpu.dot_dimension_numbers<[1], [0], [0], [1], [0, 0, 1, 1], [], []>} : vector<4x12xf32>, vector<12x12xf32>, vector<4x12xf32> -> vector<4x12xf32>
    %229 = vector.extract_strided_slice %211 {offsets = [1, 0], sizes = [1, 12], strides = [1, 1]} : vector<6x12xf32> to vector<1x12xf32>
    %230 = vector.broadcast %229 : vector<1x12xf32> to vector<4x12xf32>
    %231 = arith.addf %227, %230 : vector<4x12xf32>
    %232 = math.tanh %231 : vector<4x12xf32>
    %cst_98 = arith.constant dense<0.000000e+00> : vector<4x12xf32>
    %233 = tpu.matmul %232, %192, %cst_98 {dimension_numbers = #tpu.dot_dimension_numbers<[1], [0], [0], [1], [0, 0, 1, 1], [], []>} : vector<4x12xf32>, vector<12x12xf32>, vector<4x12xf32> -> vector<4x12xf32>
    %234 = arith.addf %233, %228 : vector<4x12xf32>
    %235 = vector.broadcast %212 : vector<1x12xf32> to vector<4x12xf32>
    %236 = arith.addf %234, %235 : vector<4x12xf32>
    %237 = math.tanh %236 : vector<4x12xf32>
    %c1_99 = arith.constant 1 : index
    %c0_100 = arith.constant 0 : index
    %c0_101 = arith.constant 0 : index
    %238 = vector.load %arg3[%c1_99, %c0_100, %c0_101] : memref<6x4x12xf32, #tpu.memory_space<vmem>>, vector<1x4x12xf32>
    %239 = vector.shape_cast %238 : vector<1x4x12xf32> to vector<4x12xf32>
    %240 = vector.shape_cast %237 : vector<4x12xf32> to vector<1x4x12xf32>
    tpu.vector_store %arg3[%c1_99, %c0_100, %c0_101], %240 {strides = array<i32>} : memref<6x4x12xf32, #tpu.memory_space<vmem>>, vector<1x4x12xf32>,
    %cst_102 = arith.constant dense<0.000000e+00> : vector<4x12xf32>
    %241 = tpu.matmul %232, %193, %cst_102 {dimension_numbers = #tpu.dot_dimension_numbers<[1], [0], [0], [1], [0, 0, 1, 1], [], []>} : vector<4x12xf32>, vector<12x12xf32>, vector<4x12xf32> -> vector<4x12xf32>
    %cst_103 = arith.constant dense<0.000000e+00> : vector<4x12xf32>
    %242 = tpu.matmul %237, %194, %cst_103 {dimension_numbers = #tpu.dot_dimension_numbers<[1], [0], [0], [1], [0, 0, 1, 1], [], []>} : vector<4x12xf32>, vector<12x12xf32>, vector<4x12xf32> -> vector<4x12xf32>
    %243 = vector.extract_strided_slice %211 {offsets = [2, 0], sizes = [1, 12], strides = [1, 1]} : vector<6x12xf32> to vector<1x12xf32>
    %244 = vector.broadcast %243 : vector<1x12xf32> to vector<4x12xf32>
    %245 = arith.addf %241, %244 : vector<4x12xf32>
    %246 = math.tanh %245 : vector<4x12xf32>
    %cst_104 = arith.constant dense<0.000000e+00> : vector<4x12xf32>
    %247 = tpu.matmul %246, %192, %cst_104 {dimension_numbers = #tpu.dot_dimension_numbers<[1], [0], [0], [1], [0, 0, 1, 1], [], []>} : vector<4x12xf32>, vector<12x12xf32>, vector<4x12xf32> -> vector<4x12xf32>
    %248 = arith.addf %247, %242 : vector<4x12xf32>
    %249 = vector.broadcast %212 : vector<1x12xf32> to vector<4x12xf32>
    %250 = arith.addf %248, %249 : vector<4x12xf32>
    %251 = math.tanh %250 : vector<4x12xf32>
    %c2_105 = arith.constant 2 : index
    %c0_106 = arith.constant 0 : index
    %c0_107 = arith.constant 0 : index
    %252 = vector.load %arg3[%c2_105, %c0_106, %c0_107] : memref<6x4x12xf32, #tpu.memory_space<vmem>>, vector<1x4x12xf32>
    %253 = vector.shape_cast %252 : vector<1x4x12xf32> to vector<4x12xf32>
    %254 = vector.shape_cast %251 : vector<4x12xf32> to vector<1x4x12xf32>
    tpu.vector_store %arg3[%c2_105, %c0_106, %c0_107], %254 {strides = array<i32>} : memref<6x4x12xf32, #tpu.memory_space<vmem>>, vector<1x4x12xf32>,
    %cst_108 = arith.constant dense<0.000000e+00> : vector<4x12xf32>
    %255 = tpu.matmul %246, %193, %cst_108 {dimension_numbers = #tpu.dot_dimension_numbers<[1], [0], [0], [1], [0, 0, 1, 1], [], []>} : vector<4x12xf32>, vector<12x12xf32>, vector<4x12xf32> -> vector<4x12xf32>
    %cst_109 = arith.constant dense<0.000000e+00> : vector<4x12xf32>
    %256 = tpu.matmul %251, %194, %cst_109 {dimension_numbers = #tpu.dot_dimension_numbers<[1], [0], [0], [1], [0, 0, 1, 1], [], []>} : vector<4x12xf32>, vector<12x12xf32>, vector<4x12xf32> -> vector<4x12xf32>
    %257 = vector.extract_strided_slice %211 {offsets = [3, 0], sizes = [1, 12], strides = [1, 1]} : vector<6x12xf32> to vector<1x12xf32>
    %258 = vector.broadcast %257 : vector<1x12xf32> to vector<4x12xf32>
    %259 = arith.addf %255, %258 : vector<4x12xf32>
    %260 = math.tanh %259 : vector<4x12xf32>
    %cst_110 = arith.constant dense<0.000000e+00> : vector<4x12xf32>
    %261 = tpu.matmul %260, %192, %cst_110 {dimension_numbers = #tpu.dot_dimension_numbers<[1], [0], [0], [1], [0, 0, 1, 1], [], []>} : vector<4x12xf32>, vector<12x12xf32>, vector<4x12xf32> -> vector<4x12xf32>
    %262 = arith.addf %261, %256 : vector<4x12xf32>
    %263 = vector.broadcast %212 : vector<1x12xf32> to vector<4x12xf32>
    %264 = arith.addf %262, %263 : vector<4x12xf32>
    %265 = math.tanh %264 : vector<4x12xf32>
    %c3_111 = arith.constant 3 : index
    %c0_112 = arith.constant 0 : index
    %c0_113 = arith.constant 0 : index
    %266 = vector.load %arg3[%c3_111, %c0_112, %c0_113] : memref<6x4x12xf32, #tpu.memory_space<vmem>>, vector<1x4x12xf32>
    %267 = vector.shape_cast %266 : vector<1x4x12xf32> to vector<4x12xf32>
    %268 = vector.shape_cast %265 : vector<4x12xf32> to vector<1x4x12xf32>
    tpu.vector_store %arg3[%c3_111, %c0_112, %c0_113], %268 {strides = array<i32>} : memref<6x4x12xf32, #tpu.memory_space<vmem>>, vector<1x4x12xf32>,
    %cst_114 = arith.constant dense<0.000000e+00> : vector<4x12xf32>
    %269 = tpu.matmul %260, %193, %cst_114 {dimension_numbers = #tpu.dot_dimension_numbers<[1], [0], [0], [1], [0, 0, 1, 1], [], []>} : vector<4x12xf32>, vector<12x12xf32>, vector<4x12xf32> -> vector<4x12xf32>
    %cst_115 = arith.constant dense<0.000000e+00> : vector<4x12xf32>
    %270 = tpu.matmul %265, %194, %cst_115 {dimension_numbers = #tpu.dot_dimension_numbers<[1], [0], [0], [1], [0, 0, 1, 1], [], []>} : vector<4x12xf32>, vector<12x12xf32>, vector<4x12xf32> -> vector<4x12xf32>
    %271 = vector.extract_strided_slice %211 {offsets = [4, 0], sizes = [1, 12], strides = [1, 1]} : vector<6x12xf32> to vector<1x12xf32>
    %272 = vector.broadcast %271 : vector<1x12xf32> to vector<4x12xf32>
    %273 = arith.addf %269, %272 : vector<4x12xf32>
    %274 = math.tanh %273 : vector<4x12xf32>
    %cst_116 = arith.constant dense<0.000000e+00> : vector<4x12xf32>
    %275 = tpu.matmul %274, %192, %cst_116 {dimension_numbers = #tpu.dot_dimension_numbers<[1], [0], [0], [1], [0, 0, 1, 1], [], []>} : vector<4x12xf32>, vector<12x12xf32>, vector<4x12xf32> -> vector<4x12xf32>
    %276 = arith.addf %275, %270 : vector<4x12xf32>
    %277 = vector.broadcast %212 : vector<1x12xf32> to vector<4x12xf32>
    %278 = arith.addf %276, %277 : vector<4x12xf32>
    %279 = math.tanh %278 : vector<4x12xf32>
    %c4_117 = arith.constant 4 : index
    %c0_118 = arith.constant 0 : index
    %c0_119 = arith.constant 0 : index
    %280 = vector.load %arg3[%c4_117, %c0_118, %c0_119] : memref<6x4x12xf32, #tpu.memory_space<vmem>>, vector<1x4x12xf32>
    %281 = vector.shape_cast %280 : vector<1x4x12xf32> to vector<4x12xf32>
    %282 = vector.shape_cast %279 : vector<4x12xf32> to vector<1x4x12xf32>
    tpu.vector_store %arg3[%c4_117, %c0_118, %c0_119], %282 {strides = array<i32>} : memref<6x4x12xf32, #tpu.memory_space<vmem>>, vector<1x4x12xf32>,
    %cst_120 = arith.constant dense<0.000000e+00> : vector<4x12xf32>
    %283 = tpu.matmul %274, %193, %cst_120 {dimension_numbers = #tpu.dot_dimension_numbers<[1], [0], [0], [1], [0, 0, 1, 1], [], []>} : vector<4x12xf32>, vector<12x12xf32>, vector<4x12xf32> -> vector<4x12xf32>
    %cst_121 = arith.constant dense<0.000000e+00> : vector<4x12xf32>
    %284 = tpu.matmul %279, %194, %cst_121 {dimension_numbers = #tpu.dot_dimension_numbers<[1], [0], [0], [1], [0, 0, 1, 1], [], []>} : vector<4x12xf32>, vector<12x12xf32>, vector<4x12xf32> -> vector<4x12xf32>
    %285 = vector.extract_strided_slice %211 {offsets = [5, 0], sizes = [1, 12], strides = [1, 1]} : vector<6x12xf32> to vector<1x12xf32>
    %286 = vector.broadcast %285 : vector<1x12xf32> to vector<4x12xf32>
    %287 = arith.addf %283, %286 : vector<4x12xf32>
    %288 = math.tanh %287 : vector<4x12xf32>
    %cst_122 = arith.constant dense<0.000000e+00> : vector<4x12xf32>
    %289 = tpu.matmul %288, %192, %cst_122 {dimension_numbers = #tpu.dot_dimension_numbers<[1], [0], [0], [1], [0, 0, 1, 1], [], []>} : vector<4x12xf32>, vector<12x12xf32>, vector<4x12xf32> -> vector<4x12xf32>
    %290 = arith.addf %289, %284 : vector<4x12xf32>
    %291 = vector.broadcast %212 : vector<1x12xf32> to vector<4x12xf32>
    %292 = arith.addf %290, %291 : vector<4x12xf32>
    %293 = math.tanh %292 : vector<4x12xf32>
    %c5_123 = arith.constant 5 : index
    %c0_124 = arith.constant 0 : index
    %c0_125 = arith.constant 0 : index
    %294 = vector.load %arg3[%c5_123, %c0_124, %c0_125] : memref<6x4x12xf32, #tpu.memory_space<vmem>>, vector<1x4x12xf32>
    %295 = vector.shape_cast %294 : vector<1x4x12xf32> to vector<4x12xf32>
    %296 = vector.shape_cast %293 : vector<4x12xf32> to vector<1x4x12xf32>
    tpu.vector_store %arg3[%c5_123, %c0_124, %c0_125], %296 {strides = array<i32>} : memref<6x4x12xf32, #tpu.memory_space<vmem>>, vector<1x4x12xf32>,
    %c0_126 = arith.constant 0 : index
    %c0_127 = arith.constant 0 : index
    %c0_128 = arith.constant 0 : index
    %297 = vector.load %arg4[%c0_126, %c0_127, %c0_128] : memref<2x4x12xf32, #tpu.memory_space<vmem>>, vector<1x4x12xf32>
    %298 = vector.shape_cast %297 : vector<1x4x12xf32> to vector<4x12xf32>
    %299 = vector.shape_cast %288 : vector<4x12xf32> to vector<1x4x12xf32>
    tpu.vector_store %arg4[%c0_126, %c0_127, %c0_128], %299 {strides = array<i32>} : memref<2x4x12xf32, #tpu.memory_space<vmem>>, vector<1x4x12xf32>,
    %c1_129 = arith.constant 1 : index
    %c0_130 = arith.constant 0 : index
    %c0_131 = arith.constant 0 : index
    %300 = vector.load %arg4[%c1_129, %c0_130, %c0_131] : memref<2x4x12xf32, #tpu.memory_space<vmem>>, vector<1x4x12xf32>
    %301 = vector.shape_cast %300 : vector<1x4x12xf32> to vector<4x12xf32>
    %302 = vector.shape_cast %293 : vector<4x12xf32> to vector<1x4x12xf32>
    tpu.vector_store %arg4[%c1_129, %c0_130, %c0_131], %302 {strides = array<i32>} : memref<2x4x12xf32, #tpu.memory_space<vmem>>, vector<1x4x12xf32>,
    return
  }
}

</mosaic_0001>

<llo_original>
// kernel: forward.1
$region0: #{forward.1}
  #allocation0 [shape = 'u32[]', space=smem, size = 0x4, offset = 0x4, fixed_abs, tag = 'smem constant byte address 0x4 - core index']
  #allocation1 [shape = 'u32[72,128]{1,0:T(1,128)}', space=vmem, size = 0x9000, scoped, tag = 'internal scratch']
  %s0 = inlined_call_operand.hbm [shape: f32[128,128], index: 0, kind: input, shape index: {}]
  %s1 = inlined_call_operand.vmem [shape: f32[48,128], index: 1, kind: input, shape index: {}]
  %s2 = inlined_call_operand.vmem [shape: f32[12,4,8], index: 2, kind: output, shape index: {0}]
  %s3 = inlined_call_operand.hbm [shape: f32[6,4,12], index: 3, kind: output, shape index: {1}]
  %s4 = inlined_call_operand.hbm [shape: f32[2,4,12], index: 4, kind: output, shape index: {2}]
  %5 = xla_tuple %s2, %s3, %s4
  %s6 = sld [smem:[#allocation0]]
  $region38: #{forward.1} parent=0
    _
  %s8 = ssub.s32 1, %s6
  %s9 = scalar_select 0, %s8, %s6
  $region1: #{forward.1} parent=0
    #allocation2 [shape = 'u8[65536]{0}', space=vmem, size = 0x10000, scoped, tag = 'input window, operand 0, single buffered']
    #allocation3 [shape = 's32[1]{0}', space=sflag, size = 0x4, scoped, tag = 'scoped memory for forward.1']
    #allocation4 [shape = 's32[1]{0}', space=sflag, size = 0x4, scoped, tag = 'scoped memory for forward.1']
    #allocation5 [shape = 'u8[12288]{0}', space=vmem, size = 0x3000, scoped, tag = 'output window, operand 1, single buffered']
    #allocation6 [shape = 'u8[4096]{0}', space=vmem, size = 0x1000, scoped, tag = 'output window, operand 2, single buffered']
    #allocation7 [shape = 's32[1]{0}', space=sflag, size = 0x4, scoped, tag = 'scoped memory for forward.1']
    %10 = vsyncpa [#allocation3], 0
    %11 = vsyncpa [#allocation4], 0
    %12 = vsyncpa [#allocation7], 0
    // Predicated region
    $region2: #{forward.1} parent=1 // pred_check
      _
    $region3: #{forward.1} parent=1 // pred_check_branch
      %14 = sbr.rel (0) target = $region5
    $region4: #{forward.1} parent=1 // pred_region
      %16 = vsyncadd [#allocation3], 0
      %s17 = sshll.u32 %s0, 4
      %s18 = int_to_ptr.hbm [resolvable:$true] %s17
      %s19 = sshll.u32 [#allocation2], 4
      %s20 = int_to_ptr.vmem [resolvable:$true] %s19
      %25 = dma.hbm_to_vmem [thread:$0]  %s18, 2048, %s20, [#allocation3], 128, 128, 8
    $region5: #{forward.1} parent=1 // pred_fallthru
      _
    // Predicated region
    $region6: #{forward.1} parent=1 // pred_check
      _
    $region7: #{forward.1} parent=1 // pred_check_branch
      %27 = sbr.rel (0) target = $region9
    $region8: #{forward.1} parent=1 // pred_region
      _
    $region9: #{forward.1} parent=1 // pred_fallthru
      _
    // Predicated region
    $region10: #{forward.1} parent=1 // pred_check
      _
    $region11: #{forward.1} parent=1 // pred_check_branch
      %29 = sbr.rel (0) target = $region13
    $region12: #{forward.1} parent=1 // pred_region
      %31 = dma.done [#allocation3], 2048
    $region13: #{forward.1} parent=1 // pred_fallthru
      _
    %v32 = vld [vmem:[%s1] sm:$0xf]
    %v33 = vld [vmem:[#allocation2] sm:$0xff]
    %v34 = vld [vmem:[#allocation2 + $0x8] sm:$0xff]
    %v35 = vld [vmem:[#allocation2 + $0x10] sm:$0xff]
    %v36 = vld [vmem:[#allocation2 + $0x18] sm:$0xff]
    %v37 = vld [vmem:[#allocation2 + $0x20] sm:$0xff]
    %v38 = vld [vmem:[#allocation2 + $0x28] sm:$0x3]
    %v39 = vld [vmem:[%s1 + $0x8] sm:$0x1]
    %v40 = vld [vmem:[%s1 + $0x10] sm:$0xff]
    %v41 = vld [vmem:[%s1 + $0x18] sm:$0xf]
    %vm42 = vcmp.gt.f32.partialorder %v39, 0.0
    %v43 = vsel %vm42, 1, 0
    %v44 = vcvt.s32.f32 %v43
    %v45 = vperm.slane %v44, 0
    %vm46 = vcmask 64512
    %v48 = vsel %vm46, %v32, 0
    %50 = vmatpush.msra.mxu0 0.0
    %51 = vmatpush.msra.mxu0 0.0
    %52 = vmatpush.msra.mxu0 0.0
    %53 = vmatpush.msra.mxu0 0.0
    %54 = vmatpush.msra.mxu0 0.0
    %55 = vmatpush.msra.mxu0 0.0
    %56 = vmatpush.msra.mxu0 0.0
    %57 = vmatpush.msra.mxu0 0.0
    %58 = vmatpush.msra.mxu0 0.0
    %59 = vmatpush.msra.mxu0 0.0
    %60 = vmatpush.msra.mxu0 0.0
    %61 = vmatpush.msra.mxu0 0.0
    %62 = vmatpush.msra.mxu0 0.0
    %63 = vmatpush.msra.mxu0 0.0
    %64 = vmatpush.msra.mxu0 0.0
    %65 = vmatpush.msra.mxu0 %v33
    %66 = vmatmul.f32.gmra.mxu0 %v48
    %v67 = vpop.f32.mrf.mxu0
    %v68 = vadd.f32 0.0, %v67
    %69 = vdwg.mxu0
    %v70 = vmul.f32 %v68, %v45
    %v71 = vperm.slane %v38, 0
    %v73 = vsel %vm46, %v40, 0
    %v76 = vsel %vm46, %v41, 0
    %78 = vmatpush.msra.mxu0 0.0
    %79 = vmatpush.msra.mxu0 0.0
    %80 = vmatpush.msra.mxu0 0.0
    %81 = vmatpush.msra.mxu0 0.0
    %82 = vmatpush.msra.mxu0 0.0
    %83 = vmatpush.msra.mxu0 0.0
    %84 = vmatpush.msra.mxu0 0.0
    %85 = vmatpush.msra.mxu0 0.0
    %86 = vmatpush.msra.mxu0 0.0
    %87 = vmatpush.msra.mxu0 0.0
    %88 = vmatpush.msra.mxu0 0.0
    %89 = vmatpush.msra.mxu0 0.0
    %90 = vmatpush.msra.mxu0 0.0
    %91 = vmatpush.msra.mxu0 0.0
    %92 = vmatpush.msra.mxu0 0.0
    %93 = vmatpush.msra.mxu0 %v34
    %94 = vmatmul.f32.gmra.mxu0 %v73
    %v95 = vpop.f32.mrf.mxu0
    %v96 = vadd.f32 %v71, %v95
    %97 = vmatmul.f32.gmra.mxu0 %v76
    %v98 = vpop.f32.mrf.mxu0
    %v99 = vadd.f32 %v71, %v98
    %100 = vdwg.mxu0
    %v102 = vsel %vm46, %v70, 0
    %104 = vmatpush.msra.mxu0 0.0
    %105 = vmatpush.msra.mxu0 0.0
    %106 = vmatpush.msra.mxu0 0.0
    %107 = vmatpush.msra.mxu0 0.0
    %108 = vmatpush.msra.mxu0 0.0
    %109 = vmatpush.msra.mxu0 0.0
    %110 = vmatpush.msra.mxu0 0.0
    %111 = vmatpush.msra.mxu0 0.0
    %112 = vmatpush.msra.mxu0 0.0
    %113 = vmatpush.msra.mxu0 0.0
    %114 = vmatpush.msra.mxu0 0.0
    %115 = vmatpush.msra.mxu0 0.0
    %116 = vmatpush.msra.mxu0 0.0
    %117 = vmatpush.msra.mxu0 0.0
    %118 = vmatpush.msra.mxu0 0.0
    %119 = vmatpush.msra.mxu0 %v37
    %120 = vmatmul.f32.gmra.mxu0 %v102
    %v121 = vpop.f32.mrf.mxu0
    %v122 = vadd.f32 0.0, %v121
    %123 = vdwg.mxu0
    %v124 = vperm.slane %v96, 0
    %125 = vmatpush.msra.mxu0 0.0
    %126 = vmatpush.msra.mxu0 0.0
    %127 = vmatpush.msra.mxu0 0.0
    %128 = vmatpush.msra.mxu0 0.0
    %129 = vmatpush.msra.mxu0 0.0
    %130 = vmatpush.msra.mxu0 0.0
    %131 = vmatpush.msra.mxu0 0.0
    %132 = vmatpush.msra.mxu0 0.0
    %133 = vmatpush.msra.mxu0 0.0
    %134 = vmatpush.msra.mxu0 0.0
    %135 = vmatpush.msra.mxu0 0.0
    %136 = vmatpush.msra.mxu0 0.0
    %137 = vmatpush.msra.mxu0 0.0
    %138 = vmatpush.msra.mxu0 0.0
    %139 = vmatpush.msra.mxu0 0.0
    %140 = vmatpush.msra.mxu0 %v36
    %141 = vmatmul.f32.gmra.mxu0 %v102
    %v142 = vpop.f32.mrf.mxu0
    %v143 = vadd.f32 %v124, %v142
    %144 = vdwg.mxu0
    %v145 = vtanh.pop %v143
    %v147 = vsel %vm46, %v145, 0
    %149 = vmatpush.msra.mxu0 0.0
    %150 = vmatpush.msra.mxu0 0.0
    %151 = vmatpush.msra.mxu0 0.0
    %152 = vmatpush.msra.mxu0 0.0
    %153 = vmatpush.msra.mxu0 0.0
    %154 = vmatpush.msra.mxu0 0.0
    %155 = vmatpush.msra.mxu0 0.0
    %156 = vmatpush.msra.mxu0 0.0
    %157 = vmatpush.msra.mxu0 0.0
    %158 = vmatpush.msra.mxu0 0.0
    %159 = vmatpush.msra.mxu0 0.0
    %160 = vmatpush.msra.mxu0 0.0
    %161 = vmatpush.msra.mxu0 0.0
    %162 = vmatpush.msra.mxu0 0.0
    %163 = vmatpush.msra.mxu0 0.0
    %164 = vmatpush.msra.mxu0 %v35
    %165 = vmatmul.f32.gmra.mxu0 %v147
    %v166 = vpop.f32.mrf.mxu0
    %v167 = vadd.f32 %v122, %v166
    %168 = vdwg.mxu0
    %v169 = vperm.slane %v38, 1
    %v170 = vadd.f32 %v167, %v169
    %v171 = vtanh.pop %v170
    %vm172 = vcmask 60416
    %173 = vst.msk [vmem:[%s2] sm:$0xf] %vm172, %v171
    %v175 = vsel %vm46, %v171, 0
    %177 = vmatpush.msra.mxu0 0.0
    %178 = vmatpush.msra.mxu0 0.0
    %179 = vmatpush.msra.mxu0 0.0
    %180 = vmatpush.msra.mxu0 0.0
    %181 = vmatpush.msra.mxu0 0.0
    %182 = vmatpush.msra.mxu0 0.0
    %183 = vmatpush.msra.mxu0 0.0
    %184 = vmatpush.msra.mxu0 0.0
    %185 = vmatpush.msra.mxu0 0.0
    %186 = vmatpush.msra.mxu0 0.0
    %187 = vmatpush.msra.mxu0 0.0
    %188 = vmatpush.msra.mxu0 0.0
    %189 = vmatpush.msra.mxu0 0.0
    %190 = vmatpush.msra.mxu0 0.0
    %191 = vmatpush.msra.mxu0 0.0
    %192 = vmatpush.msra.mxu0 %v37
    %193 = vmatmul.f32.gmra.mxu0 %v175
    %v194 = vpop.f32.mrf.mxu0
    %v195 = vadd.f32 0.0, %v194
    %196 = vdwg.mxu0
    %v197 = vperm.slane %v96, 1
    %198 = vmatpush.msra.mxu0 0.0
    %199 = vmatpush.msra.mxu0 0.0
    %200 = vmatpush.msra.mxu0 0.0
    %201 = vmatpush.msra.mxu0 0.0
    %202 = vmatpush.msra.mxu0 0.0
    %203 = vmatpush.msra.mxu0 0.0
    %204 = vmatpush.msra.mxu0 0.0
    %205 = vmatpush.msra.mxu0 0.0
    %206 = vmatpush.msra.mxu0 0.0
    %207 = vmatpush.msra.mxu0 0.0
    %208 = vmatpush.msra.mxu0 0.0
    %209 = vmatpush.msra.mxu0 0.0
    %210 = vmatpush.msra.mxu0 0.0
    %211 = vmatpush.msra.mxu0 0.0
    %212 = vmatpush.msra.mxu0 0.0
    %213 = vmatpush.msra.mxu0 %v36
    %214 = vmatmul.f32.gmra.mxu0 %v147
    %v215 = vpop.f32.mrf.mxu0
    %v216 = vadd.f32 %v197, %v215
    %217 = vdwg.mxu0
    %v218 = vtanh.pop %v216
    %v220 = vsel %vm46, %v218, 0
    %222 = vmatpush.msra.mxu0 0.0
    %223 = vmatpush.msra.mxu0 0.0
    %224 = vmatpush.msra.mxu0 0.0
    %225 = vmatpush.msra.mxu0 0.0
    %226 = vmatpush.msra.mxu0 0.0
    %227 = vmatpush.msra.mxu0 0.0
    %228 = vmatpush.msra.mxu0 0.0
    %229 = vmatpush.msra.mxu0 0.0
    %230 = vmatpush.msra.mxu0 0.0
    %231 = vmatpush.msra.mxu0 0.0
    %232 = vmatpush.msra.mxu0 0.0
    %233 = vmatpush.msra.mxu0 0.0
    %234 = vmatpush.msra.mxu0 0.0
    %235 = vmatpush.msra.mxu0 0.0
    %236 = vmatpush.msra.mxu0 0.0
    %237 = vmatpush.msra.mxu0 %v35
    %238 = vmatmul.f32.gmra.mxu0 %v220
    %v239 = vpop.f32.mrf.mxu0
    %v240 = vadd.f32 %v195, %v239
    %241 = vdwg.mxu0
    %v242 = vadd.f32 %v240, %v169
    %v243 = vtanh.pop %v242
    %s244 = scalar_lea.vmem %s2, 4
    %245 = vst.msk [vmem:[%s244] sm:$0xf] %vm172, %v243
    %v247 = vsel %vm46, %v243, 0
    %249 = vmatpush.msra.mxu0 0.0
    %250 = vmatpush.msra.mxu0 0.0
    %251 = vmatpush.msra.mxu0 0.0
    %252 = vmatpush.msra.mxu0 0.0
    %253 = vmatpush.msra.mxu0 0.0
    %254 = vmatpush.msra.mxu0 0.0
    %255 = vmatpush.msra.mxu0 0.0
    %256 = vmatpush.msra.mxu0 0.0
    %257 = vmatpush.msra.mxu0 0.0
    %258 = vmatpush.msra.mxu0 0.0
    %259 = vmatpush.msra.mxu0 0.0
    %260 = vmatpush.msra.mxu0 0.0
    %261 = vmatpush.msra.mxu0 0.0
    %262 = vmatpush.msra.mxu0 0.0
    %263 = vmatpush.msra.mxu0 0.0
    %264 = vmatpush.msra.mxu0 %v37
    %265 = vmatmul.f32.gmra.mxu0 %v247
    %v266 = vpop.f32.mrf.mxu0
    %v267 = vadd.f32 0.0, %v266
    %268 = vdwg.mxu0
    %v269 = vperm.slane %v96, 2
    %270 = vmatpush.msra.mxu0 0.0
    %271 = vmatpush.msra.mxu0 0.0
    %272 = vmatpush.msra.mxu0 0.0
    %273 = vmatpush.msra.mxu0 0.0
    %274 = vmatpush.msra.mxu0 0.0
    %275 = vmatpush.msra.mxu0 0.0
    %276 = vmatpush.msra.mxu0 0.0
    %277 = vmatpush.msra.mxu0 0.0
    %278 = vmatpush.msra.mxu0 0.0
    %279 = vmatpush.msra.mxu0 0.0
    %280 = vmatpush.msra.mxu0 0.0
    %281 = vmatpush.msra.mxu0 0.0
    %282 = vmatpush.msra.mxu0 0.0
    %283 = vmatpush.msra.mxu0 0.0
    %284 = vmatpush.msra.mxu0 0.0
    %285 = vmatpush.msra.mxu0 %v36
    %286 = vmatmul.f32.gmra.mxu0 %v220
    %v287 = vpop.f32.mrf.mxu0
    %v288 = vadd.f32 %v269, %v287
    %289 = vdwg.mxu0
    %v290 = vtanh.pop %v288
    %v292 = vsel %vm46, %v290, 0
    %294 = vmatpush.msra.mxu0 0.0
    %295 = vmatpush.msra.mxu0 0.0
    %296 = vmatpush.msra.mxu0 0.0
    %297 = vmatpush.msra.mxu0 0.0
    %298 = vmatpush.msra.mxu0 0.0
    %299 = vmatpush.msra.mxu0 0.0
    %300 = vmatpush.msra.mxu0 0.0
    %301 = vmatpush.msra.mxu0 0.0
    %302 = vmatpush.msra.mxu0 0.0
    %303 = vmatpush.msra.mxu0 0.0
    %304 = vmatpush.msra.mxu0 0.0
    %305 = vmatpush.msra.mxu0 0.0
    %306 = vmatpush.msra.mxu0 0.0
    %307 = vmatpush.msra.mxu0 0.0
    %308 = vmatpush.msra.mxu0 0.0
    %309 = vmatpush.msra.mxu0 %v35
    %310 = vmatmul.f32.gmra.mxu0 %v292
    %v311 = vpop.f32.mrf.mxu0
    %v312 = vadd.f32 %v267, %v311
    %313 = vdwg.mxu0
    %v314 = vadd.f32 %v312, %v169
    %v315 = vtanh.pop %v314
    %s316 = scalar_lea.vmem %s2, 8
    %317 = vst.msk [vmem:[%s316] sm:$0xf] %vm172, %v315
    %v319 = vsel %vm46, %v315, 0
    %321 = vmatpush.msra.mxu0 0.0
    %322 = vmatpush.msra.mxu0 0.0
    %323 = vmatpush.msra.mxu0 0.0
    %324 = vmatpush.msra.mxu0 0.0
    %325 = vmatpush.msra.mxu0 0.0
    %326 = vmatpush.msra.mxu0 0.0
    %327 = vmatpush.msra.mxu0 0.0
    %328 = vmatpush.msra.mxu0 0.0
    %329 = vmatpush.msra.mxu0 0.0
    %330 = vmatpush.msra.mxu0 0.0
    %331 = vmatpush.msra.mxu0 0.0
    %332 = vmatpush.msra.mxu0 0.0
    %333 = vmatpush.msra.mxu0 0.0
    %334 = vmatpush.msra.mxu0 0.0
    %335 = vmatpush.msra.mxu0 0.0
    %336 = vmatpush.msra.mxu0 %v37
    %337 = vmatmul.f32.gmra.mxu0 %v319
    %v338 = vpop.f32.mrf.mxu0
    %v339 = vadd.f32 0.0, %v338
    %340 = vdwg.mxu0
    %v341 = vperm.slane %v96, 3
    %342 = vmatpush.msra.mxu0 0.0
    %343 = vmatpush.msra.mxu0 0.0
    %344 = vmatpush.msra.mxu0 0.0
    %345 = vmatpush.msra.mxu0 0.0
    %346 = vmatpush.msra.mxu0 0.0
    %347 = vmatpush.msra.mxu0 0.0
    %348 = vmatpush.msra.mxu0 0.0
    %349 = vmatpush.msra.mxu0 0.0
    %350 = vmatpush.msra.mxu0 0.0
    %351 = vmatpush.msra.mxu0 0.0
    %352 = vmatpush.msra.mxu0 0.0
    %353 = vmatpush.msra.mxu0 0.0
    %354 = vmatpush.msra.mxu0 0.0
    %355 = vmatpush.msra.mxu0 0.0
    %356 = vmatpush.msra.mxu0 0.0
    %357 = vmatpush.msra.mxu0 %v36
    %358 = vmatmul.f32.gmra.mxu0 %v292
    %v359 = vpop.f32.mrf.mxu0
    %v360 = vadd.f32 %v341, %v359
    %361 = vdwg.mxu0
    %v362 = vtanh.pop %v360
    %v364 = vsel %vm46, %v362, 0
    %366 = vmatpush.msra.mxu0 0.0
    %367 = vmatpush.msra.mxu0 0.0
    %368 = vmatpush.msra.mxu0 0.0
    %369 = vmatpush.msra.mxu0 0.0
    %370 = vmatpush.msra.mxu0 0.0
    %371 = vmatpush.msra.mxu0 0.0
    %372 = vmatpush.msra.mxu0 0.0
    %373 = vmatpush.msra.mxu0 0.0
    %374 = vmatpush.msra.mxu0 0.0
    %375 = vmatpush.msra.mxu0 0.0
    %376 = vmatpush.msra.mxu0 0.0
    %377 = vmatpush.msra.mxu0 0.0
    %378 = vmatpush.msra.mxu0 0.0
    %379 = vmatpush.msra.mxu0 0.0
    %380 = vmatpush.msra.mxu0 0.0
    %381 = vmatpush.msra.mxu0 %v35
    %382 = vmatmul.f32.gmra.mxu0 %v364
    %v383 = vpop.f32.mrf.mxu0
    %v384 = vadd.f32 %v339, %v383
    %385 = vdwg.mxu0
    %v386 = vadd.f32 %v384, %v169
    %v387 = vtanh.pop %v386
    %s388 = scalar_lea.vmem %s2, 12
    %389 = vst.msk [vmem:[%s388] sm:$0xf] %vm172, %v387
    %v391 = vsel %vm46, %v387, 0
    %393 = vmatpush.msra.mxu0 0.0
    %394 = vmatpush.msra.mxu0 0.0
    %395 = vmatpush.msra.mxu0 0.0
    %396 = vmatpush.msra.mxu0 0.0
    %397 = vmatpush.msra.mxu0 0.0
    %398 = vmatpush.msra.mxu0 0.0
    %399 = vmatpush.msra.mxu0 0.0
    %400 = vmatpush.msra.mxu0 0.0
    %401 = vmatpush.msra.mxu0 0.0
    %402 = vmatpush.msra.mxu0 0.0
    %403 = vmatpush.msra.mxu0 0.0
    %404 = vmatpush.msra.mxu0 0.0
    %405 = vmatpush.msra.mxu0 0.0
    %406 = vmatpush.msra.mxu0 0.0
    %407 = vmatpush.msra.mxu0 0.0
    %408 = vmatpush.msra.mxu0 %v37
    %409 = vmatmul.f32.gmra.mxu0 %v391
    %v410 = vpop.f32.mrf.mxu0
    %v411 = vadd.f32 0.0, %v410
    %412 = vdwg.mxu0
    %v413 = vperm.slane %v96, 4
    %414 = vmatpush.msra.mxu0 0.0
    %415 = vmatpush.msra.mxu0 0.0
    %416 = vmatpush.msra.mxu0 0.0
    %417 = vmatpush.msra.mxu0 0.0
    %418 = vmatpush.msra.mxu0 0.0
    %419 = vmatpush.msra.mxu0 0.0
    %420 = vmatpush.msra.mxu0 0.0
    %421 = vmatpush.msra.mxu0 0.0
    %422 = vmatpush.msra.mxu0 0.0
    %423 = vmatpush.msra.mxu0 0.0
    %424 = vmatpush.msra.mxu0 0.0
    %425 = vmatpush.msra.mxu0 0.0
    %426 = vmatpush.msra.mxu0 0.0
    %427 = vmatpush.msra.mxu0 0.0
    %428 = vmatpush.msra.mxu0 0.0
    %429 = vmatpush.msra.mxu0 %v36
    %430 = vmatmul.f32.gmra.mxu0 %v364
    %v431 = vpop.f32.mrf.mxu0
    %v432 = vadd.f32 %v413, %v431
    %433 = vdwg.mxu0
    %v434 = vtanh.pop %v432
    %v436 = vsel %vm46, %v434, 0
    %438 = vmatpush.msra.mxu0 0.0
    %439 = vmatpush.msra.mxu0 0.0
    %440 = vmatpush.msra.mxu0 0.0
    %441 = vmatpush.msra.mxu0 0.0
    %442 = vmatpush.msra.mxu0 0.0
    %443 = vmatpush.msra.mxu0 0.0
    %444 = vmatpush.msra.mxu0 0.0
    %445 = vmatpush.msra.mxu0 0.0
    %446 = vmatpush.msra.mxu0 0.0
    %447 = vmatpush.msra.mxu0 0.0
    %448 = vmatpush.msra.mxu0 0.0
    %449 = vmatpush.msra.mxu0 0.0
    %450 = vmatpush.msra.mxu0 0.0
    %451 = vmatpush.msra.mxu0 0.0
    %452 = vmatpush.msra.mxu0 0.0
    %453 = vmatpush.msra.mxu0 %v35
    %454 = vmatmul.f32.gmra.mxu0 %v436
    %v455 = vpop.f32.mrf.mxu0
    %v456 = vadd.f32 %v411, %v455
    %457 = vdwg.mxu0
    %v458 = vadd.f32 %v456, %v169
    %v459 = vtanh.pop %v458
    %s460 = scalar_lea.vmem %s2, 16
    %461 = vst.msk [vmem:[%s460] sm:$0xf] %vm172, %v459
    %v463 = vsel %vm46, %v459, 0
    %465 = vmatpush.msra.mxu0 0.0
    %466 = vmatpush.msra.mxu0 0.0
    %467 = vmatpush.msra.mxu0 0.0
    %468 = vmatpush.msra.mxu0 0.0
    %469 = vmatpush.msra.mxu0 0.0
    %470 = vmatpush.msra.mxu0 0.0
    %471 = vmatpush.msra.mxu0 0.0
    %472 = vmatpush.msra.mxu0 0.0
    %473 = vmatpush.msra.mxu0 0.0
    %474 = vmatpush.msra.mxu0 0.0
    %475 = vmatpush.msra.mxu0 0.0
    %476 = vmatpush.msra.mxu0 0.0
    %477 = vmatpush.msra.mxu0 0.0
    %478 = vmatpush.msra.mxu0 0.0
    %479 = vmatpush.msra.mxu0 0.0
    %480 = vmatpush.msra.mxu0 %v37
    %481 = vmatmul.f32.gmra.mxu0 %v463
    %v482 = vpop.f32.mrf.mxu0
    %v483 = vadd.f32 0.0, %v482
    %484 = vdwg.mxu0
    %v485 = vperm.slane %v96, 5
    %486 = vmatpush.msra.mxu0 0.0
    %487 = vmatpush.msra.mxu0 0.0
    %488 = vmatpush.msra.mxu0 0.0
    %489 = vmatpush.msra.mxu0 0.0
    %490 = vmatpush.msra.mxu0 0.0
    %491 = vmatpush.msra.mxu0 0.0
    %492 = vmatpush.msra.mxu0 0.0
    %493 = vmatpush.msra.mxu0 0.0
    %494 = vmatpush.msra.mxu0 0.0
    %495 = vmatpush.msra.mxu0 0.0
    %496 = vmatpush.msra.mxu0 0.0
    %497 = vmatpush.msra.mxu0 0.0
    %498 = vmatpush.msra.mxu0 0.0
    %499 = vmatpush.msra.mxu0 0.0
    %500 = vmatpush.msra.mxu0 0.0
    %501 = vmatpush.msra.mxu0 %v36
    %502 = vmatmul.f32.gmra.mxu0 %v436
    %v503 = vpop.f32.mrf.mxu0
    %v504 = vadd.f32 %v485, %v503
    %505 = vdwg.mxu0
    %v506 = vtanh.pop %v504
    %v508 = vsel %vm46, %v506, 0
    %510 = vmatpush.msra.mxu0 0.0
    %511 = vmatpush.msra.mxu0 0.0
    %512 = vmatpush.msra.mxu0 0.0
    %513 = vmatpush.msra.mxu0 0.0
    %514 = vmatpush.msra.mxu0 0.0
    %515 = vmatpush.msra.mxu0 0.0
    %516 = vmatpush.msra.mxu0 0.0
    %517 = vmatpush.msra.mxu0 0.0
    %518 = vmatpush.msra.mxu0 0.0
    %519 = vmatpush.msra.mxu0 0.0
    %520 = vmatpush.msra.mxu0 0.0
    %521 = vmatpush.msra.mxu0 0.0
    %522 = vmatpush.msra.mxu0 0.0
    %523 = vmatpush.msra.mxu0 0.0
    %524 = vmatpush.msra.mxu0 0.0
    %525 = vmatpush.msra.mxu0 %v35
    %526 = vmatmul.f32.gmra.mxu0 %v508
    %v527 = vpop.f32.mrf.mxu0
    %v528 = vadd.f32 %v483, %v527
    %529 = vdwg.mxu0
    %v530 = vadd.f32 %v528, %v169
    %v531 = vtanh.pop %v530
    %s532 = scalar_lea.vmem %s2, 20
    %533 = vst.msk [vmem:[%s532] sm:$0xf] %vm172, %v531
    %v535 = vsel %vm46, %v531, 0
    %537 = vmatpush.msra.mxu0 0.0
    %538 = vmatpush.msra.mxu0 0.0
    %539 = vmatpush.msra.mxu0 0.0
    %540 = vmatpush.msra.mxu0 0.0
    %541 = vmatpush.msra.mxu0 0.0
    %542 = vmatpush.msra.mxu0 0.0
    %543 = vmatpush.msra.mxu0 0.0
    %544 = vmatpush.msra.mxu0 0.0
    %545 = vmatpush.msra.mxu0 0.0
    %546 = vmatpush.msra.mxu0 0.0
    %547 = vmatpush.msra.mxu0 0.0
    %548 = vmatpush.msra.mxu0 0.0
    %549 = vmatpush.msra.mxu0 0.0
    %550 = vmatpush.msra.mxu0 0.0
    %551 = vmatpush.msra.mxu0 0.0
    %552 = vmatpush.msra.mxu0 %v37
    %553 = vmatmul.f32.gmra.mxu0 %v535
    %v554 = vpop.f32.mrf.mxu0
    %v555 = vadd.f32 0.0, %v554
    %556 = vdwg.mxu0
    %v557 = vperm.slane %v96, 6
    %558 = vmatpush.msra.mxu0 0.0
    %559 = vmatpush.msra.mxu0 0.0
    %560 = vmatpush.msra.mxu0 0.0
    %561 = vmatpush.msra.mxu0 0.0
    %562 = vmatpush.msra.mxu0 0.0
    %563 = vmatpush.msra.mxu0 0.0
    %564 = vmatpush.msra.mxu0 0.0
    %565 = vmatpush.msra.mxu0 0.0
    %566 = vmatpush.msra.mxu0 0.0
    %567 = vmatpush.msra.mxu0 0.0
    %568 = vmatpush.msra.mxu0 0.0
    %569 = vmatpush.msra.mxu0 0.0
    %570 = vmatpush.msra.mxu0 0.0
    %571 = vmatpush.msra.mxu0 0.0
    %572 = vmatpush.msra.mxu0 0.0
    %573 = vmatpush.msra.mxu0 %v36
    %574 = vmatmul.f32.gmra.mxu0 %v508
    %v575 = vpop.f32.mrf.mxu0
    %v576 = vadd.f32 %v557, %v575
    %577 = vdwg.mxu0
    %v578 = vtanh.pop %v576
    %v580 = vsel %vm46, %v578, 0
    %582 = vmatpush.msra.mxu0 0.0
    %583 = vmatpush.msra.mxu0 0.0
    %584 = vmatpush.msra.mxu0 0.0
    %585 = vmatpush.msra.mxu0 0.0
    %586 = vmatpush.msra.mxu0 0.0
    %587 = vmatpush.msra.mxu0 0.0
    %588 = vmatpush.msra.mxu0 0.0
    %589 = vmatpush.msra.mxu0 0.0
    %590 = vmatpush.msra.mxu0 0.0
    %591 = vmatpush.msra.mxu0 0.0
    %592 = vmatpush.msra.mxu0 0.0
    %593 = vmatpush.msra.mxu0 0.0
    %594 = vmatpush.msra.mxu0 0.0
    %595 = vmatpush.msra.mxu0 0.0
    %596 = vmatpush.msra.mxu0 0.0
    %597 = vmatpush.msra.mxu0 %v35
    %598 = vmatmul.f32.gmra.mxu0 %v580
    %v599 = vpop.f32.mrf.mxu0
    %v600 = vadd.f32 %v555, %v599
    %601 = vdwg.mxu0
    %v602 = vadd.f32 %v600, %v169
    %v603 = vtanh.pop %v602
    %s604 = scalar_lea.vmem %s2, 24
    %605 = vst.msk [vmem:[%s604] sm:$0xf] %vm172, %v603
    %v607 = vsel %vm46, %v603, 0
    %609 = vmatpush.msra.mxu0 0.0
    %610 = vmatpush.msra.mxu0 0.0
    %611 = vmatpush.msra.mxu0 0.0
    %612 = vmatpush.msra.mxu0 0.0
    %613 = vmatpush.msra.mxu0 0.0
    %614 = vmatpush.msra.mxu0 0.0
    %615 = vmatpush.msra.mxu0 0.0
    %616 = vmatpush.msra.mxu0 0.0
    %617 = vmatpush.msra.mxu0 0.0
    %618 = vmatpush.msra.mxu0 0.0
    %619 = vmatpush.msra.mxu0 0.0
    %620 = vmatpush.msra.mxu0 0.0
    %621 = vmatpush.msra.mxu0 0.0
    %622 = vmatpush.msra.mxu0 0.0
    %623 = vmatpush.msra.mxu0 0.0
    %624 = vmatpush.msra.mxu0 %v37
    %625 = vmatmul.f32.gmra.mxu0 %v607
    %v626 = vpop.f32.mrf.mxu0
    %v627 = vadd.f32 0.0, %v626
    %628 = vdwg.mxu0
    %v629 = vperm.slane %v96, 7
    %630 = vmatpush.msra.mxu0 0.0
    %631 = vmatpush.msra.mxu0 0.0
    %632 = vmatpush.msra.mxu0 0.0
    %633 = vmatpush.msra.mxu0 0.0
    %634 = vmatpush.msra.mxu0 0.0
    %635 = vmatpush.msra.mxu0 0.0
    %636 = vmatpush.msra.mxu0 0.0
    %637 = vmatpush.msra.mxu0 0.0
    %638 = vmatpush.msra.mxu0 0.0
    %639 = vmatpush.msra.mxu0 0.0
    %640 = vmatpush.msra.mxu0 0.0
    %641 = vmatpush.msra.mxu0 0.0
    %642 = vmatpush.msra.mxu0 0.0
    %643 = vmatpush.msra.mxu0 0.0
    %644 = vmatpush.msra.mxu0 0.0
    %645 = vmatpush.msra.mxu0 %v36
    %646 = vmatmul.f32.gmra.mxu0 %v580
    %v647 = vpop.f32.mrf.mxu0
    %v648 = vadd.f32 %v629, %v647
    %649 = vdwg.mxu0
    %v650 = vtanh.pop %v648
    %v652 = vsel %vm46, %v650, 0
    %654 = vmatpush.msra.mxu0 0.0
    %655 = vmatpush.msra.mxu0 0.0
    %656 = vmatpush.msra.mxu0 0.0
    %657 = vmatpush.msra.mxu0 0.0
    %658 = vmatpush.msra.mxu0 0.0
    %659 = vmatpush.msra.mxu0 0.0
    %660 = vmatpush.msra.mxu0 0.0
    %661 = vmatpush.msra.mxu0 0.0
    %662 = vmatpush.msra.mxu0 0.0
    %663 = vmatpush.msra.mxu0 0.0
    %664 = vmatpush.msra.mxu0 0.0
    %665 = vmatpush.msra.mxu0 0.0
    %666 = vmatpush.msra.mxu0 0.0
    %667 = vmatpush.msra.mxu0 0.0
    %668 = vmatpush.msra.mxu0 0.0
    %669 = vmatpush.msra.mxu0 %v35
    %670 = vmatmul.f32.gmra.mxu0 %v652
    %v671 = vpop.f32.mrf.mxu0
    %v672 = vadd.f32 %v627, %v671
    %673 = vdwg.mxu0
    %v674 = vadd.f32 %v672, %v169
    %v675 = vtanh.pop %v674
    %s676 = scalar_lea.vmem %s2, 28
    %677 = vst.msk [vmem:[%s676] sm:$0xf] %vm172, %v675
    %v679 = vsel %vm46, %v675, 0
    %681 = vmatpush.msra.mxu0 0.0
    %682 = vmatpush.msra.mxu0 0.0
    %683 = vmatpush.msra.mxu0 0.0
    %684 = vmatpush.msra.mxu0 0.0
    %685 = vmatpush.msra.mxu0 0.0
    %686 = vmatpush.msra.mxu0 0.0
    %687 = vmatpush.msra.mxu0 0.0
    %688 = vmatpush.msra.mxu0 0.0
    %689 = vmatpush.msra.mxu0 0.0
    %690 = vmatpush.msra.mxu0 0.0
    %691 = vmatpush.msra.mxu0 0.0
    %692 = vmatpush.msra.mxu0 0.0
    %693 = vmatpush.msra.mxu0 0.0
    %694 = vmatpush.msra.mxu0 0.0
    %695 = vmatpush.msra.mxu0 0.0
    %696 = vmatpush.msra.mxu0 %v37
    %697 = vmatmul.f32.gmra.mxu0 %v679
    %v698 = vpop.f32.mrf.mxu0
    %v699 = vadd.f32 0.0, %v698
    %700 = vdwg.mxu0
    %v701 = vperm.slane %v99, 0
    %702 = vmatpush.msra.mxu0 0.0
    %703 = vmatpush.msra.mxu0 0.0
    %704 = vmatpush.msra.mxu0 0.0
    %705 = vmatpush.msra.mxu0 0.0
    %706 = vmatpush.msra.mxu0 0.0
    %707 = vmatpush.msra.mxu0 0.0
    %708 = vmatpush.msra.mxu0 0.0
    %709 = vmatpush.msra.mxu0 0.0
    %710 = vmatpush.msra.mxu0 0.0
    %711 = vmatpush.msra.mxu0 0.0
    %712 = vmatpush.msra.mxu0 0.0
    %713 = vmatpush.msra.mxu0 0.0
    %714 = vmatpush.msra.mxu0 0.0
    %715 = vmatpush.msra.mxu0 0.0
    %716 = vmatpush.msra.mxu0 0.0
    %717 = vmatpush.msra.mxu0 %v36
    %718 = vmatmul.f32.gmra.mxu0 %v652
    %v719 = vpop.f32.mrf.mxu0
    %v720 = vadd.f32 %v701, %v719
    %721 = vdwg.mxu0
    %v722 = vtanh.pop %v720
    %v724 = vsel %vm46, %v722, 0
    %726 = vmatpush.msra.mxu0 0.0
    %727 = vmatpush.msra.mxu0 0.0
    %728 = vmatpush.msra.mxu0 0.0
    %729 = vmatpush.msra.mxu0 0.0
    %730 = vmatpush.msra.mxu0 0.0
    %731 = vmatpush.msra.mxu0 0.0
    %732 = vmatpush.msra.mxu0 0.0
    %733 = vmatpush.msra.mxu0 0.0
    %734 = vmatpush.msra.mxu0 0.0
    %735 = vmatpush.msra.mxu0 0.0
    %736 = vmatpush.msra.mxu0 0.0
    %737 = vmatpush.msra.mxu0 0.0
    %738 = vmatpush.msra.mxu0 0.0
    %739 = vmatpush.msra.mxu0 0.0
    %740 = vmatpush.msra.mxu0 0.0
    %741 = vmatpush.msra.mxu0 %v35
    %742 = vmatmul.f32.gmra.mxu0 %v724
    %v743 = vpop.f32.mrf.mxu0
    %v744 = vadd.f32 %v699, %v743
    %745 = vdwg.mxu0
    %v746 = vadd.f32 %v744, %v169
    %v747 = vtanh.pop %v746
    %s748 = scalar_lea.vmem %s2, 32
    %749 = vst.msk [vmem:[%s748] sm:$0xf] %vm172, %v747
    %v751 = vsel %vm46, %v747, 0
    %753 = vmatpush.msra.mxu0 0.0
    %754 = vmatpush.msra.mxu0 0.0
    %755 = vmatpush.msra.mxu0 0.0
    %756 = vmatpush.msra.mxu0 0.0
    %757 = vmatpush.msra.mxu0 0.0
    %758 = vmatpush.msra.mxu0 0.0
    %759 = vmatpush.msra.mxu0 0.0
    %760 = vmatpush.msra.mxu0 0.0
    %761 = vmatpush.msra.mxu0 0.0
    %762 = vmatpush.msra.mxu0 0.0
    %763 = vmatpush.msra.mxu0 0.0
    %764 = vmatpush.msra.mxu0 0.0
    %765 = vmatpush.msra.mxu0 0.0
    %766 = vmatpush.msra.mxu0 0.0
    %767 = vmatpush.msra.mxu0 0.0
    %768 = vmatpush.msra.mxu0 %v37
    %769 = vmatmul.f32.gmra.mxu0 %v751
    %v770 = vpop.f32.mrf.mxu0
    %v771 = vadd.f32 0.0, %v770
    %772 = vdwg.mxu0
    %v773 = vperm.slane %v99, 1
    %774 = vmatpush.msra.mxu0 0.0
    %775 = vmatpush.msra.mxu0 0.0
    %776 = vmatpush.msra.mxu0 0.0
    %777 = vmatpush.msra.mxu0 0.0
    %778 = vmatpush.msra.mxu0 0.0
    %779 = vmatpush.msra.mxu0 0.0
    %780 = vmatpush.msra.mxu0 0.0
    %781 = vmatpush.msra.mxu0 0.0
    %782 = vmatpush.msra.mxu0 0.0
    %783 = vmatpush.msra.mxu0 0.0
    %784 = vmatpush.msra.mxu0 0.0
    %785 = vmatpush.msra.mxu0 0.0
    %786 = vmatpush.msra.mxu0 0.0
    %787 = vmatpush.msra.mxu0 0.0
    %788 = vmatpush.msra.mxu0 0.0
    %789 = vmatpush.msra.mxu0 %v36
    %790 = vmatmul.f32.gmra.mxu0 %v724
    %v791 = vpop.f32.mrf.mxu0
    %v792 = vadd.f32 %v773, %v791
    %793 = vdwg.mxu0
    %v794 = vtanh.pop %v792
    %v796 = vsel %vm46, %v794, 0
    %798 = vmatpush.msra.mxu0 0.0
    %799 = vmatpush.msra.mxu0 0.0
    %800 = vmatpush.msra.mxu0 0.0
    %801 = vmatpush.msra.mxu0 0.0
    %802 = vmatpush.msra.mxu0 0.0
    %803 = vmatpush.msra.mxu0 0.0
    %804 = vmatpush.msra.mxu0 0.0
    %805 = vmatpush.msra.mxu0 0.0
    %806 = vmatpush.msra.mxu0 0.0
    %807 = vmatpush.msra.mxu0 0.0
    %808 = vmatpush.msra.mxu0 0.0
    %809 = vmatpush.msra.mxu0 0.0
    %810 = vmatpush.msra.mxu0 0.0
    %811 = vmatpush.msra.mxu0 0.0
    %812 = vmatpush.msra.mxu0 0.0
    %813 = vmatpush.msra.mxu0 %v35
    %814 = vmatmul.f32.gmra.mxu0 %v796
    %v815 = vpop.f32.mrf.mxu0
    %v816 = vadd.f32 %v771, %v815
    %817 = vdwg.mxu0
    %v818 = vadd.f32 %v816, %v169
    %v819 = vtanh.pop %v818
    %s820 = scalar_lea.vmem %s2, 36
    %821 = vst.msk [vmem:[%s820] sm:$0xf] %vm172, %v819
    %v823 = vsel %vm46, %v819, 0
    %825 = vmatpush.msra.mxu0 0.0
    %826 = vmatpush.msra.mxu0 0.0
    %827 = vmatpush.msra.mxu0 0.0
    %828 = vmatpush.msra.mxu0 0.0
    %829 = vmatpush.msra.mxu0 0.0
    %830 = vmatpush.msra.mxu0 0.0
    %831 = vmatpush.msra.mxu0 0.0
    %832 = vmatpush.msra.mxu0 0.0
    %833 = vmatpush.msra.mxu0 0.0
    %834 = vmatpush.msra.mxu0 0.0
    %835 = vmatpush.msra.mxu0 0.0
    %836 = vmatpush.msra.mxu0 0.0
    %837 = vmatpush.msra.mxu0 0.0
    %838 = vmatpush.msra.mxu0 0.0
    %839 = vmatpush.msra.mxu0 0.0
    %840 = vmatpush.msra.mxu0 %v37
    %841 = vmatmul.f32.gmra.mxu0 %v823
    %v842 = vpop.f32.mrf.mxu0
    %v843 = vadd.f32 0.0, %v842
    %844 = vdwg.mxu0
    %v845 = vperm.slane %v99, 2
    %846 = vmatpush.msra.mxu0 0.0
    %847 = vmatpush.msra.mxu0 0.0
    %848 = vmatpush.msra.mxu0 0.0
    %849 = vmatpush.msra.mxu0 0.0
    %850 = vmatpush.msra.mxu0 0.0
    %851 = vmatpush.msra.mxu0 0.0
    %852 = vmatpush.msra.mxu0 0.0
    %853 = vmatpush.msra.mxu0 0.0
    %854 = vmatpush.msra.mxu0 0.0
    %855 = vmatpush.msra.mxu0 0.0
    %856 = vmatpush.msra.mxu0 0.0
    %857 = vmatpush.msra.mxu0 0.0
    %858 = vmatpush.msra.mxu0 0.0
    %859 = vmatpush.msra.mxu0 0.0
    %860 = vmatpush.msra.mxu0 0.0
    %861 = vmatpush.msra.mxu0 %v36
    %862 = vmatmul.f32.gmra.mxu0 %v796
    %v863 = vpop.f32.mrf.mxu0
    %v864 = vadd.f32 %v845, %v863
    %865 = vdwg.mxu0
    %v866 = vtanh.pop %v864
    %v868 = vsel %vm46, %v866, 0
    %870 = vmatpush.msra.mxu0 0.0
    %871 = vmatpush.msra.mxu0 0.0
    %872 = vmatpush.msra.mxu0 0.0
    %873 = vmatpush.msra.mxu0 0.0
    %874 = vmatpush.msra.mxu0 0.0
    %875 = vmatpush.msra.mxu0 0.0
    %876 = vmatpush.msra.mxu0 0.0
    %877 = vmatpush.msra.mxu0 0.0
    %878 = vmatpush.msra.mxu0 0.0
    %879 = vmatpush.msra.mxu0 0.0
    %880 = vmatpush.msra.mxu0 0.0
    %881 = vmatpush.msra.mxu0 0.0
    %882 = vmatpush.msra.mxu0 0.0
    %883 = vmatpush.msra.mxu0 0.0
    %884 = vmatpush.msra.mxu0 0.0
    %885 = vmatpush.msra.mxu0 %v35
    %886 = vmatmul.f32.gmra.mxu0 %v868
    %v887 = vpop.f32.mrf.mxu0
    %v888 = vadd.f32 %v843, %v887
    %889 = vdwg.mxu0
    %v890 = vadd.f32 %v888, %v169
    %v891 = vtanh.pop %v890
    %s892 = scalar_lea.vmem %s2, 40
    %893 = vst.msk [vmem:[%s892] sm:$0xf] %vm172, %v891
    %v895 = vsel %vm46, %v891, 0
    %897 = vmatpush.msra.mxu0 0.0
    %898 = vmatpush.msra.mxu0 0.0
    %899 = vmatpush.msra.mxu0 0.0
    %900 = vmatpush.msra.mxu0 0.0
    %901 = vmatpush.msra.mxu0 0.0
    %902 = vmatpush.msra.mxu0 0.0
    %903 = vmatpush.msra.mxu0 0.0
    %904 = vmatpush.msra.mxu0 0.0
    %905 = vmatpush.msra.mxu0 0.0
    %906 = vmatpush.msra.mxu0 0.0
    %907 = vmatpush.msra.mxu0 0.0
    %908 = vmatpush.msra.mxu0 0.0
    %909 = vmatpush.msra.mxu0 0.0
    %910 = vmatpush.msra.mxu0 0.0
    %911 = vmatpush.msra.mxu0 0.0
    %912 = vmatpush.msra.mxu0 %v37
    %913 = vmatmul.f32.gmra.mxu0 %v895
    %v914 = vpop.f32.mrf.mxu0
    %v915 = vadd.f32 0.0, %v914
    %916 = vdwg.mxu0
    %v917 = vperm.slane %v99, 3
    %918 = vmatpush.msra.mxu0 0.0
    %919 = vmatpush.msra.mxu0 0.0
    %920 = vmatpush.msra.mxu0 0.0
    %921 = vmatpush.msra.mxu0 0.0
    %922 = vmatpush.msra.mxu0 0.0
    %923 = vmatpush.msra.mxu0 0.0
    %924 = vmatpush.msra.mxu0 0.0
    %925 = vmatpush.msra.mxu0 0.0
    %926 = vmatpush.msra.mxu0 0.0
    %927 = vmatpush.msra.mxu0 0.0
    %928 = vmatpush.msra.mxu0 0.0
    %929 = vmatpush.msra.mxu0 0.0
    %930 = vmatpush.msra.mxu0 0.0
    %931 = vmatpush.msra.mxu0 0.0
    %932 = vmatpush.msra.mxu0 0.0
    %933 = vmatpush.msra.mxu0 %v36
    %934 = vmatmul.f32.gmra.mxu0 %v868
    %v935 = vpop.f32.mrf.mxu0
    %v936 = vadd.f32 %v917, %v935
    %937 = vdwg.mxu0
    %v938 = vtanh.pop %v936
    %v940 = vsel %vm46, %v938, 0
    %942 = vmatpush.msra.mxu0 0.0
    %943 = vmatpush.msra.mxu0 0.0
    %944 = vmatpush.msra.mxu0 0.0
    %945 = vmatpush.msra.mxu0 0.0
    %946 = vmatpush.msra.mxu0 0.0
    %947 = vmatpush.msra.mxu0 0.0
    %948 = vmatpush.msra.mxu0 0.0
    %949 = vmatpush.msra.mxu0 0.0
    %950 = vmatpush.msra.mxu0 0.0
    %951 = vmatpush.msra.mxu0 0.0
    %952 = vmatpush.msra.mxu0 0.0
    %953 = vmatpush.msra.mxu0 0.0
    %954 = vmatpush.msra.mxu0 0.0
    %955 = vmatpush.msra.mxu0 0.0
    %956 = vmatpush.msra.mxu0 0.0
    %957 = vmatpush.msra.mxu0 %v35
    %958 = vmatmul.f32.gmra.mxu0 %v940
    %v959 = vpop.f32.mrf.mxu0
    %v960 = vadd.f32 %v915, %v959
    %961 = vdwg.mxu0
    %v962 = vadd.f32 %v960, %v169
    %v963 = vtanh.pop %v962
    %s964 = scalar_lea.vmem %s2, 44
    %965 = vst.msk [vmem:[%s964] sm:$0xf] %vm172, %v963
    %v966 = vld [vmem:[#allocation2 + $0x30] sm:$0xff]
    %v967 = vld [vmem:[#allocation2 + $0x38] sm:$0xff]
    %v968 = vld [vmem:[#allocation2 + $0x40] sm:$0xf]
    %v969 = vld [vmem:[#allocation2 + $0x48] sm:$0xff]
    %v970 = vld [vmem:[#allocation2 + $0x50] sm:$0xf]
    %v971 = vld [vmem:[#allocation2 + $0x58] sm:$0xff]
    %v972 = vld [vmem:[#allocation2 + $0x60] sm:$0xf]
    %v973 = vld [vmem:[#allocation2 + $0x68] sm:$0xff]
    %v974 = vld [vmem:[#allocation2 + $0x70] sm:$0xf]
    %v975 = vld [vmem:[#allocation2 + $0x78] sm:$0x3]
    %v976 = vld [vmem:[%s1 + $0x20] sm:$0x1]
    %v977 = vld [vmem:[%s1 + $0x28] sm:$0x3f]
    %vm978 = vcmp.gt.f32.partialorder %v976, 0.0
    %v979 = vsel %vm978, 1, 0
    %v980 = vcvt.s32.f32 %v979
    %v981 = vperm.slane %v980, 0
    %982 = vmatpush.msra.mxu0 0.0
    %983 = vmatpush.msra.mxu0 0.0
    %984 = vmatpush.msra.mxu0 0.0
    %985 = vmatpush.msra.mxu0 0.0
    %986 = vmatpush.msra.mxu0 0.0
    %987 = vmatpush.msra.mxu0 0.0
    %988 = vmatpush.msra.mxu0 0.0
    %989 = vmatpush.msra.mxu0 0.0
    %990 = vmatpush.msra.mxu0 0.0
    %991 = vmatpush.msra.mxu0 0.0
    %992 = vmatpush.msra.mxu0 0.0
    %993 = vmatpush.msra.mxu0 0.0
    %994 = vmatpush.msra.mxu0 0.0
    %995 = vmatpush.msra.mxu0 0.0
    %996 = vmatpush.msra.mxu0 0.0
    %997 = vmatpush.msra.mxu0 %v966
    %998 = vmatmul.f32.gmra.mxu0 %v940
    %v999 = vpop.f32.mrf.mxu0
    %v1000 = vadd.f32 0.0, %v999
    %1001 = vdwg.mxu0
    %v1002 = vmul.f32 %v1000, %v981
    %v1004 = vsel %vm46, %v963, 0
    %1006 = vmatpush.msra.mxu0 0.0
    %1007 = vmatpush.msra.mxu0 0.0
    %1008 = vmatpush.msra.mxu0 0.0
    %1009 = vmatpush.msra.mxu0 0.0
    %1010 = vmatpush.msra.mxu0 0.0
    %1011 = vmatpush.msra.mxu0 0.0
    %1012 = vmatpush.msra.mxu0 0.0
    %1013 = vmatpush.msra.mxu0 0.0
    %1014 = vmatpush.msra.mxu0 0.0
    %1015 = vmatpush.msra.mxu0 0.0
    %1016 = vmatpush.msra.mxu0 0.0
    %1017 = vmatpush.msra.mxu0 0.0
    %1018 = vmatpush.msra.mxu0 0.0
    %1019 = vmatpush.msra.mxu0 0.0
    %1020 = vmatpush.msra.mxu0 0.0
    %1021 = vmatpush.msra.mxu0 %v966
    %1022 = vmatmul.f32.gmra.mxu0 %v1004
    %v1023 = vpop.f32.mrf.mxu0
    %v1024 = vadd.f32 0.0, %v1023
    %1025 = vdwg.mxu0
    %v1026 = vmul.f32 %v1024, %v981
    %v1027 = vperm.slane %v975, 0
    %vm1028 = vcmask 97280
    %v1030 = vsel %vm1028, %v977, 0
    %vm1032 = vcmask 1043456
    %v1034 = vsel %vm1032, %v968, 0
    %1036 = vmatpush.msra.mxu0 0.0
    %1037 = vmatpush.msra.mxu0 0.0
    %1038 = vmatpush.msra.mxu0 0.0
    %1039 = vmatpush.msra.mxu0 0.0
    %1040 = vmatpush.msra.mxu0 0.0
    %1041 = vmatpush.msra.mxu0 0.0
    %1042 = vmatpush.msra.mxu0 0.0
    %1043 = vmatpush.msra.mxu0 0.0
    %1044 = vmatpush.msra.mxu0 0.0
    %1045 = vmatpush.msra.mxu0 0.0
    %1046 = vmatpush.msra.mxu0 0.0
    %1047 = vmatpush.msra.mxu0 0.0
    %1048 = vmatpush.msra.mxu0 0.0
    %1049 = vmatpush.msra.mxu0 0.0
    %1050 = vmatpush.msra.mxu0 %v1034
    %1051 = vmatpush.msra.mxu0 %v967
    %1052 = vmatmul.f32.gmra.mxu0 %v1030
    %v1053 = vpop.f32.mrf.mxu0
    %v1054 = vadd.f32 %v1027, %v1053
    %1055 = vdwg.mxu0
    %v1057 = vsel %vm1028, %v1026, 0
    %v1060 = vsel %vm1032, %v974, 0
    %1062 = vmatpush.msra.mxu0 0.0
    %1063 = vmatpush.msra.mxu0 0.0
    %1064 = vmatpush.msra.mxu0 0.0
    %1065 = vmatpush.msra.mxu0 0.0
    %1066 = vmatpush.msra.mxu0 0.0
    %1067 = vmatpush.msra.mxu0 0.0
    %1068 = vmatpush.msra.mxu0 0.0
    %1069 = vmatpush.msra.mxu0 0.0
    %1070 = vmatpush.msra.mxu0 0.0
    %1071 = vmatpush.msra.mxu0 0.0
    %1072 = vmatpush.msra.mxu0 0.0
    %1073 = vmatpush.msra.mxu0 0.0
    %1074 = vmatpush.msra.mxu0 0.0
    %1075 = vmatpush.msra.mxu0 0.0
    %1076 = vmatpush.msra.mxu0 %v1060
    %1077 = vmatpush.msra.mxu0 %v973
    %1078 = vmatmul.f32.gmra.mxu0 %v1057
    %v1079 = vpop.f32.mrf.mxu0
    %v1080 = vadd.f32 0.0, %v1079
    %1081 = vdwg.mxu0
    %v1082 = vperm.slane %v1054, 0
    %v1084 = vsel %vm1028, %v1002, 0
    %v1087 = vsel %vm1032, %v972, 0
    %1089 = vmatpush.msra.mxu0 0.0
    %1090 = vmatpush.msra.mxu0 0.0
    %1091 = vmatpush.msra.mxu0 0.0
    %1092 = vmatpush.msra.mxu0 0.0
    %1093 = vmatpush.msra.mxu0 0.0
    %1094 = vmatpush.msra.mxu0 0.0
    %1095 = vmatpush.msra.mxu0 0.0
    %1096 = vmatpush.msra.mxu0 0.0
    %1097 = vmatpush.msra.mxu0 0.0
    %1098 = vmatpush.msra.mxu0 0.0
    %1099 = vmatpush.msra.mxu0 0.0
    %1100 = vmatpush.msra.mxu0 0.0
    %1101 = vmatpush.msra.mxu0 0.0
    %1102 = vmatpush.msra.mxu0 0.0
    %1103 = vmatpush.msra.mxu0 %v1087
    %1104 = vmatpush.msra.mxu0 %v971
    %1105 = vmatmul.f32.gmra.mxu0 %v1084
    %v1106 = vpop.f32.mrf.mxu0
    %v1107 = vadd.f32 %v1082, %v1106
    %1108 = vdwg.mxu0
    %v1109 = vtanh.pop %v1107
    %v1111 = vsel %vm1028, %v1109, 0
    %v1114 = vsel %vm1032, %v970, 0
    %1116 = vmatpush.msra.mxu0 0.0
    %1117 = vmatpush.msra.mxu0 0.0
    %1118 = vmatpush.msra.mxu0 0.0
    %1119 = vmatpush.msra.mxu0 0.0
    %1120 = vmatpush.msra.mxu0 0.0
    %1121 = vmatpush.msra.mxu0 0.0
    %1122 = vmatpush.msra.mxu0 0.0
    %1123 = vmatpush.msra.mxu0 0.0
    %1124 = vmatpush.msra.mxu0 0.0
    %1125 = vmatpush.msra.mxu0 0.0
    %1126 = vmatpush.msra.mxu0 0.0
    %1127 = vmatpush.msra.mxu0 0.0
    %1128 = vmatpush.msra.mxu0 0.0
    %1129 = vmatpush.msra.mxu0 0.0
    %1130 = vmatpush.msra.mxu0 %v1114
    %1131 = vmatpush.msra.mxu0 %v969
    %1132 = vmatmul.f32.gmra.mxu0 %v1111
    %v1133 = vpop.f32.mrf.mxu0
    %v1134 = vadd.f32 %v1080, %v1133
    %1135 = vdwg.mxu0
    %v1136 = vperm.slane %v975, 1
    %v1137 = vadd.f32 %v1134, %v1136
    %v1138 = vtanh.pop %v1137
    %vm1139 = vcmask 93184
    %1140 = vst.msk [vmem:[#allocation5] sm:$0xf] %vm1139, %v1138
    %v1142 = vsel %vm1028, %v1138, 0
    %1144 = vmatpush.msra.mxu0 0.0
    %1145 = vmatpush.msra.mxu0 0.0
    %1146 = vmatpush.msra.mxu0 0.0
    %1147 = vmatpush.msra.mxu0 0.0
    %1148 = vmatpush.msra.mxu0 0.0
    %1149 = vmatpush.msra.mxu0 0.0
    %1150 = vmatpush.msra.mxu0 0.0
    %1151 = vmatpush.msra.mxu0 0.0
    %1152 = vmatpush.msra.mxu0 0.0
    %1153 = vmatpush.msra.mxu0 0.0
    %1154 = vmatpush.msra.mxu0 0.0
    %1155 = vmatpush.msra.mxu0 0.0
    %1156 = vmatpush.msra.mxu0 0.0
    %1157 = vmatpush.msra.mxu0 0.0
    %1158 = vmatpush.msra.mxu0 %v1060
    %1159 = vmatpush.msra.mxu0 %v973
    %1160 = vmatmul.f32.gmra.mxu0 %v1142
    %v1161 = vpop.f32.mrf.mxu0
    %v1162 = vadd.f32 0.0, %v1161
    %1163 = vdwg.mxu0
    %v1164 = vperm.slane %v1054, 1
    %1165 = vmatpush.msra.mxu0 0.0
    %1166 = vmatpush.msra.mxu0 0.0
    %1167 = vmatpush.msra.mxu0 0.0
    %1168 = vmatpush.msra.mxu0 0.0
    %1169 = vmatpush.msra.mxu0 0.0
    %1170 = vmatpush.msra.mxu0 0.0
    %1171 = vmatpush.msra.mxu0 0.0
    %1172 = vmatpush.msra.mxu0 0.0
    %1173 = vmatpush.msra.mxu0 0.0
    %1174 = vmatpush.msra.mxu0 0.0
    %1175 = vmatpush.msra.mxu0 0.0
    %1176 = vmatpush.msra.mxu0 0.0
    %1177 = vmatpush.msra.mxu0 0.0
    %1178 = vmatpush.msra.mxu0 0.0
    %1179 = vmatpush.msra.mxu0 %v1087
    %1180 = vmatpush.msra.mxu0 %v971
    %1181 = vmatmul.f32.gmra.mxu0 %v1111
    %v1182 = vpop.f32.mrf.mxu0
    %v1183 = vadd.f32 %v1164, %v1182
    %1184 = vdwg.mxu0
    %v1185 = vtanh.pop %v1183
    %v1187 = vsel %vm1028, %v1185, 0
    %1189 = vmatpush.msra.mxu0 0.0
    %1190 = vmatpush.msra.mxu0 0.0
    %1191 = vmatpush.msra.mxu0 0.0
    %1192 = vmatpush.msra.mxu0 0.0
    %1193 = vmatpush.msra.mxu0 0.0
    %1194 = vmatpush.msra.mxu0 0.0
    %1195 = vmatpush.msra.mxu0 0.0
    %1196 = vmatpush.msra.mxu0 0.0
    %1197 = vmatpush.msra.mxu0 0.0
    %1198 = vmatpush.msra.mxu0 0.0
    %1199 = vmatpush.msra.mxu0 0.0
    %1200 = vmatpush.msra.mxu0 0.0
    %1201 = vmatpush.msra.mxu0 0.0
    %1202 = vmatpush.msra.mxu0 0.0
    %1203 = vmatpush.msra.mxu0 %v1114
    %1204 = vmatpush.msra.mxu0 %v969
    %1205 = vmatmul.f32.gmra.mxu0 %v1187
    %v1206 = vpop.f32.mrf.mxu0
    %v1207 = vadd.f32 %v1162, %v1206
    %1208 = vdwg.mxu0
    %v1209 = vadd.f32 %v1207, %v1136
    %v1210 = vtanh.pop %v1209
    %s1211 = scalar_lea.vmem [#allocation5], 4
    %1212 = vst.msk [vmem:[%s1211] sm:$0xf] %vm1139, %v1210
    %v1214 = vsel %vm1028, %v1210, 0
    %1216 = vmatpush.msra.mxu0 0.0
    %1217 = vmatpush.msra.mxu0 0.0
    %1218 = vmatpush.msra.mxu0 0.0
    %1219 = vmatpush.msra.mxu0 0.0
    %1220 = vmatpush.msra.mxu0 0.0
    %1221 = vmatpush.msra.mxu0 0.0
    %1222 = vmatpush.msra.mxu0 0.0
    %1223 = vmatpush.msra.mxu0 0.0
    %1224 = vmatpush.msra.mxu0 0.0
    %1225 = vmatpush.msra.mxu0 0.0
    %1226 = vmatpush.msra.mxu0 0.0
    %1227 = vmatpush.msra.mxu0 0.0
    %1228 = vmatpush.msra.mxu0 0.0
    %1229 = vmatpush.msra.mxu0 0.0
    %1230 = vmatpush.msra.mxu0 %v1060
    %1231 = vmatpush.msra.mxu0 %v973
    %1232 = vmatmul.f32.gmra.mxu0 %v1214
    %v1233 = vpop.f32.mrf.mxu0
    %v1234 = vadd.f32 0.0, %v1233
    %1235 = vdwg.mxu0
    %v1236 = vperm.slane %v1054, 2
    %1237 = vmatpush.msra.mxu0 0.0
    %1238 = vmatpush.msra.mxu0 0.0
    %1239 = vmatpush.msra.mxu0 0.0
    %1240 = vmatpush.msra.mxu0 0.0
    %1241 = vmatpush.msra.mxu0 0.0
    %1242 = vmatpush.msra.mxu0 0.0
    %1243 = vmatpush.msra.mxu0 0.0
    %1244 = vmatpush.msra.mxu0 0.0
    %1245 = vmatpush.msra.mxu0 0.0
    %1246 = vmatpush.msra.mxu0 0.0
    %1247 = vmatpush.msra.mxu0 0.0
    %1248 = vmatpush.msra.mxu0 0.0
    %1249 = vmatpush.msra.mxu0 0.0
    %1250 = vmatpush.msra.mxu0 0.0
    %1251 = vmatpush.msra.mxu0 %v1087
    %1252 = vmatpush.msra.mxu0 %v971
    %1253 = vmatmul.f32.gmra.mxu0 %v1187
    %v1254 = vpop.f32.mrf.mxu0
    %v1255 = vadd.f32 %v1236, %v1254
    %1256 = vdwg.mxu0
    %v1257 = vtanh.pop %v1255
    %v1259 = vsel %vm1028, %v1257, 0
    %1261 = vmatpush.msra.mxu0 0.0
    %1262 = vmatpush.msra.mxu0 0.0
    %1263 = vmatpush.msra.mxu0 0.0
    %1264 = vmatpush.msra.mxu0 0.0
    %1265 = vmatpush.msra.mxu0 0.0
    %1266 = vmatpush.msra.mxu0 0.0
    %1267 = vmatpush.msra.mxu0 0.0
    %1268 = vmatpush.msra.mxu0 0.0
    %1269 = vmatpush.msra.mxu0 0.0
    %1270 = vmatpush.msra.mxu0 0.0
    %1271 = vmatpush.msra.mxu0 0.0
    %1272 = vmatpush.msra.mxu0 0.0
    %1273 = vmatpush.msra.mxu0 0.0
    %1274 = vmatpush.msra.mxu0 0.0
    %1275 = vmatpush.msra.mxu0 %v1114
    %1276 = vmatpush.msra.mxu0 %v969
    %1277 = vmatmul.f32.gmra.mxu0 %v1259
    %v1278 = vpop.f32.mrf.mxu0
    %v1279 = vadd.f32 %v1234, %v1278
    %1280 = vdwg.mxu0
    %v1281 = vadd.f32 %v1279, %v1136
    %v1282 = vtanh.pop %v1281
    %s1283 = scalar_lea.vmem [#allocation5], 8
    %1284 = vst.msk [vmem:[%s1283] sm:$0xf] %vm1139, %v1282
    %v1286 = vsel %vm1028, %v1282, 0
    %1288 = vmatpush.msra.mxu0 0.0
    %1289 = vmatpush.msra.mxu0 0.0
    %1290 = vmatpush.msra.mxu0 0.0
    %1291 = vmatpush.msra.mxu0 0.0
    %1292 = vmatpush.msra.mxu0 0.0
    %1293 = vmatpush.msra.mxu0 0.0
    %1294 = vmatpush.msra.mxu0 0.0
    %1295 = vmatpush.msra.mxu0 0.0
    %1296 = vmatpush.msra.mxu0 0.0
    %1297 = vmatpush.msra.mxu0 0.0
    %1298 = vmatpush.msra.mxu0 0.0
    %1299 = vmatpush.msra.mxu0 0.0
    %1300 = vmatpush.msra.mxu0 0.0
    %1301 = vmatpush.msra.mxu0 0.0
    %1302 = vmatpush.msra.mxu0 %v1060
    %1303 = vmatpush.msra.mxu0 %v973
    %1304 = vmatmul.f32.gmra.mxu0 %v1286
    %v1305 = vpop.f32.mrf.mxu0
    %v1306 = vadd.f32 0.0, %v1305
    %1307 = vdwg.mxu0
    %v1308 = vperm.slane %v1054, 3
    %1309 = vmatpush.msra.mxu0 0.0
    %1310 = vmatpush.msra.mxu0 0.0
    %1311 = vmatpush.msra.mxu0 0.0
    %1312 = vmatpush.msra.mxu0 0.0
    %1313 = vmatpush.msra.mxu0 0.0
    %1314 = vmatpush.msra.mxu0 0.0
    %1315 = vmatpush.msra.mxu0 0.0
    %1316 = vmatpush.msra.mxu0 0.0
    %1317 = vmatpush.msra.mxu0 0.0
    %1318 = vmatpush.msra.mxu0 0.0
    %1319 = vmatpush.msra.mxu0 0.0
    %1320 = vmatpush.msra.mxu0 0.0
    %1321 = vmatpush.msra.mxu0 0.0
    %1322 = vmatpush.msra.mxu0 0.0
    %1323 = vmatpush.msra.mxu0 %v1087
    %1324 = vmatpush.msra.mxu0 %v971
    %1325 = vmatmul.f32.gmra.mxu0 %v1259
    %v1326 = vpop.f32.mrf.mxu0
    %v1327 = vadd.f32 %v1308, %v1326
    %1328 = vdwg.mxu0
    %v1329 = vtanh.pop %v1327
    %v1331 = vsel %vm1028, %v1329, 0
    %1333 = vmatpush.msra.mxu0 0.0
    %1334 = vmatpush.msra.mxu0 0.0
    %1335 = vmatpush.msra.mxu0 0.0
    %1336 = vmatpush.msra.mxu0 0.0
    %1337 = vmatpush.msra.mxu0 0.0
    %1338 = vmatpush.msra.mxu0 0.0
    %1339 = vmatpush.msra.mxu0 0.0
    %1340 = vmatpush.msra.mxu0 0.0
    %1341 = vmatpush.msra.mxu0 0.0
    %1342 = vmatpush.msra.mxu0 0.0
    %1343 = vmatpush.msra.mxu0 0.0
    %1344 = vmatpush.msra.mxu0 0.0
    %1345 = vmatpush.msra.mxu0 0.0
    %1346 = vmatpush.msra.mxu0 0.0
    %1347 = vmatpush.msra.mxu0 %v1114
    %1348 = vmatpush.msra.mxu0 %v969
    %1349 = vmatmul.f32.gmra.mxu0 %v1331
    %v1350 = vpop.f32.mrf.mxu0
    %v1351 = vadd.f32 %v1306, %v1350
    %1352 = vdwg.mxu0
    %v1353 = vadd.f32 %v1351, %v1136
    %v1354 = vtanh.pop %v1353
    %s1355 = scalar_lea.vmem [#allocation5], 12
    %1356 = vst.msk [vmem:[%s1355] sm:$0xf] %vm1139, %v1354
    %v1358 = vsel %vm1028, %v1354, 0
    %1360 = vmatpush.msra.mxu0 0.0
    %1361 = vmatpush.msra.mxu0 0.0
    %1362 = vmatpush.msra.mxu0 0.0
    %1363 = vmatpush.msra.mxu0 0.0
    %1364 = vmatpush.msra.mxu0 0.0
    %1365 = vmatpush.msra.mxu0 0.0
    %1366 = vmatpush.msra.mxu0 0.0
    %1367 = vmatpush.msra.mxu0 0.0
    %1368 = vmatpush.msra.mxu0 0.0
    %1369 = vmatpush.msra.mxu0 0.0
    %1370 = vmatpush.msra.mxu0 0.0
    %1371 = vmatpush.msra.mxu0 0.0
    %1372 = vmatpush.msra.mxu0 0.0
    %1373 = vmatpush.msra.mxu0 0.0
    %1374 = vmatpush.msra.mxu0 %v1060
    %1375 = vmatpush.msra.mxu0 %v973
    %1376 = vmatmul.f32.gmra.mxu0 %v1358
    %v1377 = vpop.f32.mrf.mxu0
    %v1378 = vadd.f32 0.0, %v1377
    %1379 = vdwg.mxu0
    %v1380 = vperm.slane %v1054, 4
    %1381 = vmatpush.msra.mxu0 0.0
    %1382 = vmatpush.msra.mxu0 0.0
    %1383 = vmatpush.msra.mxu0 0.0
    %1384 = vmatpush.msra.mxu0 0.0
    %1385 = vmatpush.msra.mxu0 0.0
    %1386 = vmatpush.msra.mxu0 0.0
    %1387 = vmatpush.msra.mxu0 0.0
    %1388 = vmatpush.msra.mxu0 0.0
    %1389 = vmatpush.msra.mxu0 0.0
    %1390 = vmatpush.msra.mxu0 0.0
    %1391 = vmatpush.msra.mxu0 0.0
    %1392 = vmatpush.msra.mxu0 0.0
    %1393 = vmatpush.msra.mxu0 0.0
    %1394 = vmatpush.msra.mxu0 0.0
    %1395 = vmatpush.msra.mxu0 %v1087
    %1396 = vmatpush.msra.mxu0 %v971
    %1397 = vmatmul.f32.gmra.mxu0 %v1331
    %v1398 = vpop.f32.mrf.mxu0
    %v1399 = vadd.f32 %v1380, %v1398
    %1400 = vdwg.mxu0
    %v1401 = vtanh.pop %v1399
    %v1403 = vsel %vm1028, %v1401, 0
    %1405 = vmatpush.msra.mxu0 0.0
    %1406 = vmatpush.msra.mxu0 0.0
    %1407 = vmatpush.msra.mxu0 0.0
    %1408 = vmatpush.msra.mxu0 0.0
    %1409 = vmatpush.msra.mxu0 0.0
    %1410 = vmatpush.msra.mxu0 0.0
    %1411 = vmatpush.msra.mxu0 0.0
    %1412 = vmatpush.msra.mxu0 0.0
    %1413 = vmatpush.msra.mxu0 0.0
    %1414 = vmatpush.msra.mxu0 0.0
    %1415 = vmatpush.msra.mxu0 0.0
    %1416 = vmatpush.msra.mxu0 0.0
    %1417 = vmatpush.msra.mxu0 0.0
    %1418 = vmatpush.msra.mxu0 0.0
    %1419 = vmatpush.msra.mxu0 %v1114
    %1420 = vmatpush.msra.mxu0 %v969
    %1421 = vmatmul.f32.gmra.mxu0 %v1403
    %v1422 = vpop.f32.mrf.mxu0
    %v1423 = vadd.f32 %v1378, %v1422
    %1424 = vdwg.mxu0
    %v1425 = vadd.f32 %v1423, %v1136
    %v1426 = vtanh.pop %v1425
    %s1427 = scalar_lea.vmem [#allocation5], 16
    %1428 = vst.msk [vmem:[%s1427] sm:$0xf] %vm1139, %v1426
    %v1430 = vsel %vm1028, %v1426, 0
    %1432 = vmatpush.msra.mxu0 0.0
    %1433 = vmatpush.msra.mxu0 0.0
    %1434 = vmatpush.msra.mxu0 0.0
    %1435 = vmatpush.msra.mxu0 0.0
    %1436 = vmatpush.msra.mxu0 0.0
    %1437 = vmatpush.msra.mxu0 0.0
    %1438 = vmatpush.msra.mxu0 0.0
    %1439 = vmatpush.msra.mxu0 0.0
    %1440 = vmatpush.msra.mxu0 0.0
    %1441 = vmatpush.msra.mxu0 0.0
    %1442 = vmatpush.msra.mxu0 0.0
    %1443 = vmatpush.msra.mxu0 0.0
    %1444 = vmatpush.msra.mxu0 0.0
    %1445 = vmatpush.msra.mxu0 0.0
    %1446 = vmatpush.msra.mxu0 %v1060
    %1447 = vmatpush.msra.mxu0 %v973
    %1448 = vmatmul.f32.gmra.mxu0 %v1430
    %v1449 = vpop.f32.mrf.mxu0
    %v1450 = vadd.f32 0.0, %v1449
    %1451 = vdwg.mxu0
    %v1452 = vperm.slane %v1054, 5
    %1453 = vmatpush.msra.mxu0 0.0
    %1454 = vmatpush.msra.mxu0 0.0
    %1455 = vmatpush.msra.mxu0 0.0
    %1456 = vmatpush.msra.mxu0 0.0
    %1457 = vmatpush.msra.mxu0 0.0
    %1458 = vmatpush.msra.mxu0 0.0
    %1459 = vmatpush.msra.mxu0 0.0
    %1460 = vmatpush.msra.mxu0 0.0
    %1461 = vmatpush.msra.mxu0 0.0
    %1462 = vmatpush.msra.mxu0 0.0
    %1463 = vmatpush.msra.mxu0 0.0
    %1464 = vmatpush.msra.mxu0 0.0
    %1465 = vmatpush.msra.mxu0 0.0
    %1466 = vmatpush.msra.mxu0 0.0
    %1467 = vmatpush.msra.mxu0 %v1087
    %1468 = vmatpush.msra.mxu0 %v971
    %1469 = vmatmul.f32.gmra.mxu0 %v1403
    %v1470 = vpop.f32.mrf.mxu0
    %v1471 = vadd.f32 %v1452, %v1470
    %1472 = vdwg.mxu0
    %v1473 = vtanh.pop %v1471
    %v1475 = vsel %vm1028, %v1473, 0
    %1477 = vmatpush.msra.mxu0 0.0
    %1478 = vmatpush.msra.mxu0 0.0
    %1479 = vmatpush.msra.mxu0 0.0
    %1480 = vmatpush.msra.mxu0 0.0
    %1481 = vmatpush.msra.mxu0 0.0
    %1482 = vmatpush.msra.mxu0 0.0
    %1483 = vmatpush.msra.mxu0 0.0
    %1484 = vmatpush.msra.mxu0 0.0
    %1485 = vmatpush.msra.mxu0 0.0
    %1486 = vmatpush.msra.mxu0 0.0
    %1487 = vmatpush.msra.mxu0 0.0
    %1488 = vmatpush.msra.mxu0 0.0
    %1489 = vmatpush.msra.mxu0 0.0
    %1490 = vmatpush.msra.mxu0 0.0
    %1491 = vmatpush.msra.mxu0 %v1114
    %1492 = vmatpush.msra.mxu0 %v969
    %1493 = vmatmul.f32.gmra.mxu0 %v1475
    %v1494 = vpop.f32.mrf.mxu0
    %v1495 = vadd.f32 %v1450, %v1494
    %1496 = vdwg.mxu0
    %v1497 = vadd.f32 %v1495, %v1136
    %v1498 = vtanh.pop %v1497
    %s1499 = scalar_lea.vmem [#allocation5], 20
    %1500 = vst.msk [vmem:[%s1499] sm:$0xf] %vm1139, %v1498
    %1501 = vst.msk [vmem:[#allocation6] sm:$0xf] %vm1139, %v1473
    %s1502 = scalar_lea.vmem [#allocation6], 4
    %1503 = vst.msk [vmem:[%s1502] sm:$0xf] %vm1139, %v1498
    // Predicated region
    $region14: #{forward.1} parent=1 // pred_check
      _
    $region15: #{forward.1} parent=1 // pred_check_branch
      %1505 = sbr.rel (0) target = $region17
    $region16: #{forward.1} parent=1 // pred_region
      _
    $region17: #{forward.1} parent=1 // pred_fallthru
      _
    // Predicated region
    $region18: #{forward.1} parent=1 // pred_check
      _
    $region19: #{forward.1} parent=1 // pred_check_branch
      %1507 = sbr.rel (0) target = $region21
    $region20: #{forward.1} parent=1 // pred_region
      %1509 = vsyncadd [#allocation4], 0
      %s1510 = sshll.u32 [#allocation5], 4
      %s1511 = int_to_ptr.vmem [resolvable:$true] %s1510
      %s1512 = sshll.u32 %s3, 4
      %s1513 = int_to_ptr.hbm [resolvable:$true] %s1512
      %1518 = dma.vmem_to_hbm [thread:$0]  %s1511, 384, %s1513, [#allocation4], 64, 64, 4
    $region21: #{forward.1} parent=1 // pred_fallthru
      _
    // Predicated region
    $region22: #{forward.1} parent=1 // pred_check
      _
    $region23: #{forward.1} parent=1 // pred_check_branch
      %1520 = sbr.rel (0) target = $region25
    $region24: #{forward.1} parent=1 // pred_region
      %1522 = vsyncadd [#allocation7], 0
      %s1523 = sshll.u32 [#allocation6], 4
      %s1524 = int_to_ptr.vmem [resolvable:$true] %s1523
      %s1525 = sshll.u32 %s4, 4
      %s1526 = int_to_ptr.hbm [resolvable:$true] %s1525
      %1531 = dma.vmem_to_hbm [thread:$0]  %s1524, 128, %s1526, [#allocation7], 64, 64, 4
    $region25: #{forward.1} parent=1 // pred_fallthru
      _
    // Predicated region
    $region26: #{forward.1} parent=1 // pred_check
      _
    $region27: #{forward.1} parent=1 // pred_check_branch
      %1533 = sbr.rel (0) target = $region29
    $region28: #{forward.1} parent=1 // pred_region
      _
    $region29: #{forward.1} parent=1 // pred_fallthru
      _
    // Predicated region
    $region30: #{forward.1} parent=1 // pred_check
      _
    $region31: #{forward.1} parent=1 // pred_check_branch
      %1535 = sbr.rel (0) target = $region33
    $region32: #{forward.1} parent=1 // pred_region
      %1537 = dma.done [#allocation4], 384
    $region33: #{forward.1} parent=1 // pred_fallthru
      _
    // Predicated region
    $region34: #{forward.1} parent=1 // pred_check
      _
    $region35: #{forward.1} parent=1 // pred_check_branch
      %1539 = sbr.rel (0) target = $region37
    $region36: #{forward.1} parent=1 // pred_region
      %1541 = dma.done [#allocation7], 128
    $region37: #{forward.1} parent=1 // pred_fallthru
      _
    %1542 = vsyncpa [#allocation3], 1
    %1543 = vsyncpa [#allocation4], 1
    %1544 = vsyncpa [#allocation7], 1

</llo_original>
